<compile_context>
chip_gen: v6e
topology: v6e:2x2x1
jax: 0.10.0
libtpu: 0.0.40
codegen_flags: <defaults>
</compile_context>

<pallas_src>
import functools

import jax
import jax.numpy as jnp
from jax.experimental import pallas as pl
from jax.experimental.pallas import tpu as pltpu


_SQRT_HALF = 0.7071067811865476


def _gelu_exact(x):
    # nn.GELU() default: 0.5 * x * (1 + erf(x / sqrt(2)))
    return 0.5 * x * (1.0 + jax.lax.erf(x * _SQRT_HALF))


def _round_up(n, m):
    return ((n + m - 1) // m) * m


def mlp_kernel(x_ref, w1_ref, b1_ref, w2_ref, b2_ref, o_ref, acc_ref):
    """One (tm, E) token tile; hidden dim streamed along grid axis 1.

    x_ref : (tm, E)   token tile (compute dtype)
    w1_ref: (E, th)   fc1 weight chunk (compute dtype)
    b1_ref: (1, th)   fc1 bias chunk (f32)
    w2_ref: (th, E)   fc2 weight chunk (compute dtype)
    b2_ref: (1, E)    fc2 bias (f32)
    o_ref : (tm, E)   output tile
    acc_ref:(tm, E)   f32 accumulator scratch (persists across H steps)
    """
    j = pl.program_id(1)

    @pl.when(j == 0)
    def _():
        acc_ref[...] = jnp.zeros_like(acc_ref)

    # fc1 chunk: (tm, E) @ (E, th) -> (tm, th), f32 accumulation on the MXU.
    h = jnp.dot(x_ref[...], w1_ref[...], preferred_element_type=jnp.float32)
    h = h + b1_ref[...]

    # GELU (exact erf, matches nn.GELU default) in f32.
    h = _gelu_exact(h)

    # TODO(synk): dropout(p=0.2) is identity here (eval/inference mode); a
    # training-mode version would use pltpu.prng_seed / pltpu.prng_random_bits.

    # fc2 partial contribution: (tm, th) @ (th, E), accumulated over H chunks.
    acc_ref[...] += jnp.dot(
        h.astype(w2_ref.dtype), w2_ref[...], preferred_element_type=jnp.float32
    )

    @pl.when(j == pl.num_programs(1) - 1)
    def _():
        o_ref[...] = (acc_ref[...] + b2_ref[...]).astype(o_ref.dtype)


@functools.partial(jax.jit, static_argnames=("tm", "th", "compute_dtype"))
def mlp_forward(x, w1, b1, w2, b2, *, tm=256, th=512, compute_dtype=None):
    """x: (..., E). Returns same shape/dtype as x."""
    orig_shape = x.shape
    orig_dtype = x.dtype
    E = x.shape[-1]
    H = w1.shape[1]

    # Lane-dense feature dims (multiple of 128).
    assert E % 128 == 0, "embed_dim must be a multiple of 128 (pad if needed)"
    assert H % 128 == 0, "mlp_dim must be a multiple of 128 (pad if needed)"

    if compute_dtype is None:
        compute_dtype = orig_dtype

    x2d = x.reshape(-1, E)
    N = x2d.shape[0]

    # Row tile: large for MXU occupancy, shrink for tiny inputs; pad ragged N.
    tm = min(tm, _round_up(N, 8))
    Np = _round_up(N, tm)
    if Np != N:
        x2d = jnp.pad(x2d, ((0, Np - N), (0, 0)))

    # Hidden-dim chunk size.
    th = min(th, H)
    assert H % th == 0, "mlp_dim must be divisible by the hidden chunk size th"

    # MXU inputs in compute_dtype (e.g. bf16 on v6e/v7x); biases stay f32.
    xc = x2d.astype(compute_dtype)
    w1c = w1.astype(compute_dtype)
    w2c = w2.astype(compute_dtype)
    b1f = b1.reshape(1, H).astype(jnp.float32)
    b2f = b2.reshape(1, E).astype(jnp.float32)

    grid = (Np // tm, H // th)  # (parallel token tiles, arbitrary H reduction)

    itemsize_c = jnp.dtype(compute_dtype).itemsize
    cost = pl.CostEstimate(
        flops=4 * Np * E * H,                       # two matmuls
        transcendentals=Np * H,                     # erf
        bytes_accessed=(Np * E + 2 * E * H) * itemsize_c
        + (H + E) * 4
        + Np * E * jnp.dtype(orig_dtype).itemsize,
    )

    out = pl.pallas_call(
        mlp_kernel,
        out_shape=jax.ShapeDtypeStruct((Np, E), orig_dtype),
        grid_spec=pltpu.PrefetchScalarGridSpec(
            num_scalar_prefetch=0,
            grid=grid,
            in_specs=[
                pl.BlockSpec((tm, E), lambda i, j: (i, 0)),   # x tile (resident over j)
                pl.BlockSpec((E, th), lambda i, j: (0, j)),   # W1 chunk (streamed)
                pl.BlockSpec((1, th), lambda i, j: (0, j)),   # b1 chunk
                pl.BlockSpec((th, E), lambda i, j: (j, 0)),   # W2 chunk (streamed)
                pl.BlockSpec((1, E), lambda i, j: (0, 0)),    # b2
            ],
            out_specs=pl.BlockSpec((tm, E), lambda i, j: (i, 0)),
            scratch_shapes=[pltpu.VMEM((tm, E), jnp.float32)],
        ),
        compiler_params=pltpu.CompilerParams(
            dimension_semantics=("parallel", "arbitrary"),
        ),
        cost_estimate=cost,
    )(xc, w1c, b1f, w2c, b2f)

    return out[:N].reshape(orig_shape)


def reference_mlp(x2d, w1, b1, w2, b2):
    h = x2d @ w1 + b1.reshape(1, -1)
    h = 0.5 * h * (1.0 + jax.lax.erf(h * _SQRT_HALF))
    return h @ w2 + b2.reshape(1, -1)


if __name__ == "__main__":
    # Scaled-down (but lane-aligned, multiple-of-128) version of the module's
    # embed_dim=768 / mlp_dim=3072: batch=2, seq=256, embed=256, mlp=512.
    B, S, E, Hdim = 2, 256, 256, 512

    key = jax.random.PRNGKey(0)
    kx, kw1, kb1, kw2, kb2 = jax.random.split(key, 5)

    x = jax.random.normal(kx, (B, S, E), dtype=jnp.float32)
    w1 = jax.random.uniform(kw1, (E, Hdim), jnp.float32, -1.0, 1.0) / jnp.sqrt(E)
    b1 = jax.random.uniform(kb1, (Hdim,), jnp.float32, -1.0, 1.0) / jnp.sqrt(E)
    w2 = jax.random.uniform(kw2, (Hdim, E), jnp.float32, -1.0, 1.0) / jnp.sqrt(Hdim)
    b2 = jax.random.uniform(kb2, (E,), jnp.float32, -1.0, 1.0) / jnp.sqrt(Hdim)

    ref = reference_mlp(x.reshape(-1, E), w1, b1, w2, b2).reshape(B, S, E)

    # f32 path: 2 token tiles x 2 hidden chunks, tight tolerance.
    out_f32 = mlp_forward(x, w1, b1, w2, b2, tm=256, th=256)
    jax.block_until_ready(out_f32)
    err_f32 = float(jnp.max(jnp.abs(out_f32 - ref)))
    assert jnp.allclose(out_f32, ref, atol=2e-3, rtol=2e-3), (
        f"f32 mismatch: max abs err {err_f32}"
    )

    # bf16 MXU-input path (f32 accumulation / f32 bias+GELU), looser tolerance.
    out_bf16 = mlp_forward(
        x, w1, b1, w2, b2, tm=256, th=256, compute_dtype=jnp.bfloat16
    )
    jax.block_until_ready(out_bf16)
    err_bf16 = float(jnp.max(jnp.abs(out_bf16 - ref)))
    assert jnp.allclose(out_bf16, ref, atol=8e-2, rtol=8e-2), (
        f"bf16 mismatch: max abs err {err_bf16}"
    )

    print("KERNEL_OK")
</pallas_src>

<mosaic_0001>
module attributes {stable_mosaic.version = 11 : i64} {
  func.func @mlp_kernel(%arg0: i32, %arg1: i32, %arg2: memref<256x256xf32, #tpu.memory_space<vmem>>, %arg3: memref<256x256xf32, #tpu.memory_space<vmem>>, %arg4: memref<1x256xf32, #tpu.memory_space<vmem>>, %arg5: memref<256x256xf32, #tpu.memory_space<vmem>>, %arg6: memref<1x256xf32, #tpu.memory_space<vmem>>, %arg7: memref<256x256xf32, #tpu.memory_space<vmem>>, %arg8: memref<256x256xf32, #tpu.memory_space<vmem>>) attributes {dimension_semantics = [#tpu.dimension_semantics<parallel>, #tpu.dimension_semantics<arbitrary>], iteration_bounds = array<i64: 2, 2>, scalar_prefetch = 0 : i64, scratch_operands = 1 : i64, tpu.core_type = #tpu.core_type<tc>, window_params = [{transform_indices = @transform_0, window_bounds = array<i64: 256, 256>}, {transform_indices = @transform_1, window_bounds = array<i64: 256, 256>}, {transform_indices = @transform_2, window_bounds = array<i64: 1, 256>}, {transform_indices = @transform_3, window_bounds = array<i64: 256, 256>}, {pipeline_mode = #tpu.pipeline_mode<synchronous>, transform_indices = @transform_4, window_bounds = array<i64: 1, 256>}, {transform_indices = @transform_5, window_bounds = array<i64: 256, 256>}]} {
    %c0_i32 = arith.constant 0 : i32
    %0 = arith.cmpi eq, %arg1, %c0_i32 : i32
    %1 = arith.extui %0 : i1 to i32
    %c0_i32_0 = arith.constant 0 : i32
    %2 = arith.cmpi ne, %1, %c0_i32_0 : i32
    scf.if %2 {
      %cst_17 = arith.constant 0.000000e+00 : f32
      %25 = vector.broadcast %cst_17 : f32 to vector<256x256xf32>
      %c0_18 = arith.constant 0 : index
      %c0_19 = arith.constant 0 : index
      %26 = vector.load %arg8[%c0_18, %c0_19] : memref<256x256xf32, #tpu.memory_space<vmem>>, vector<256x256xf32>
      tpu.vector_store %arg8[%c0_18, %c0_19], %25 {strides = array<i32>} : memref<256x256xf32, #tpu.memory_space<vmem>>, vector<256x256xf32>,
    } else {
    }
    %c0 = arith.constant 0 : index
    %c0_1 = arith.constant 0 : index
    %3 = vector.load %arg2[%c0, %c0_1] : memref<256x256xf32, #tpu.memory_space<vmem>>, vector<256x256xf32>
    %c0_2 = arith.constant 0 : index
    %c0_3 = arith.constant 0 : index
    %4 = vector.load %arg3[%c0_2, %c0_3] : memref<256x256xf32, #tpu.memory_space<vmem>>, vector<256x256xf32>
    %cst = arith.constant dense<0.000000e+00> : vector<256x256xf32>
    %5 = tpu.matmul %3, %4, %cst {dimension_numbers = #tpu.dot_dimension_numbers<[1], [0], [0], [1], [0, 0, 1, 1], [], []>} : vector<256x256xf32>, vector<256x256xf32>, vector<256x256xf32> -> vector<256x256xf32>
    %c0_4 = arith.constant 0 : index
    %c0_5 = arith.constant 0 : index
    %6 = vector.load %arg4[%c0_4, %c0_5] : memref<1x256xf32, #tpu.memory_space<vmem>>, vector<1x256xf32>
    %7 = vector.broadcast %6 : vector<1x256xf32> to vector<256x256xf32>
    %8 = arith.addf %5, %7 : vector<256x256xf32>
    %cst_6 = arith.constant 5.000000e-01 : f32
    %9 = vector.broadcast %cst_6 : f32 to vector<256x256xf32>
    %10 = arith.mulf %9, %8 : vector<256x256xf32>
    %cst_7 = arith.constant 0.707106769 : f32
    %11 = vector.broadcast %cst_7 : f32 to vector<256x256xf32>
    %12 = arith.mulf %8, %11 : vector<256x256xf32>
    %13 = math.erf %12 : vector<256x256xf32>
    %cst_8 = arith.constant 1.000000e+00 : f32
    %14 = vector.broadcast %cst_8 : f32 to vector<256x256xf32>
    %15 = arith.addf %14, %13 : vector<256x256xf32>
    %16 = arith.mulf %10, %15 : vector<256x256xf32>
    %c0_9 = arith.constant 0 : index
    %c0_10 = arith.constant 0 : index
    %17 = vector.load %arg8[%c0_9, %c0_10] : memref<256x256xf32, #tpu.memory_space<vmem>>, vector<256x256xf32>
    %c0_11 = arith.constant 0 : index
    %c0_12 = arith.constant 0 : index
    %18 = vector.load %arg5[%c0_11, %c0_12] : memref<256x256xf32, #tpu.memory_space<vmem>>, vector<256x256xf32>
    %cst_13 = arith.constant dense<0.000000e+00> : vector<256x256xf32>
    %19 = tpu.matmul %16, %18, %cst_13 {dimension_numbers = #tpu.dot_dimension_numbers<[1], [0], [0], [1], [0, 0, 1, 1], [], []>} : vector<256x256xf32>, vector<256x256xf32>, vector<256x256xf32> -> vector<256x256xf32>
    %20 = arith.addf %17, %19 : vector<256x256xf32>
    %c0_14 = arith.constant 0 : index
    %c0_15 = arith.constant 0 : index
    %21 = vector.load %arg8[%c0_14, %c0_15] : memref<256x256xf32, #tpu.memory_space<vmem>>, vector<256x256xf32>
    tpu.vector_store %arg8[%c0_14, %c0_15], %20 {strides = array<i32>} : memref<256x256xf32, #tpu.memory_space<vmem>>, vector<256x256xf32>,
    %c1_i32 = arith.constant 1 : i32
    %22 = arith.cmpi eq, %arg1, %c1_i32 : i32
    %23 = arith.extui %22 : i1 to i32
    %c0_i32_16 = arith.constant 0 : i32
    %24 = arith.cmpi ne, %23, %c0_i32_16 : i32
    scf.if %24 {
      %c0_17 = arith.constant 0 : index
      %c0_18 = arith.constant 0 : index
      %25 = vector.load %arg8[%c0_17, %c0_18] : memref<256x256xf32, #tpu.memory_space<vmem>>, vector<256x256xf32>
      %c0_19 = arith.constant 0 : index
      %c0_20 = arith.constant 0 : index
      %26 = vector.load %arg6[%c0_19, %c0_20] : memref<1x256xf32, #tpu.memory_space<vmem>>, vector<1x256xf32>
      %27 = vector.broadcast %26 : vector<1x256xf32> to vector<256x256xf32>
      %28 = arith.addf %25, %27 : vector<256x256xf32>
      %c0_21 = arith.constant 0 : index
      %c0_22 = arith.constant 0 : index
      %29 = vector.load %arg7[%c0_21, %c0_22] : memref<256x256xf32, #tpu.memory_space<vmem>>, vector<256x256xf32>
      tpu.vector_store %arg7[%c0_21, %c0_22], %28 {strides = array<i32>} : memref<256x256xf32, #tpu.memory_space<vmem>>, vector<256x256xf32>,
    } else {
    }
    return
  }
  func.func @transform_0(%arg0: i32, %arg1: i32) -> (i32, i32) {
    %c0_i32 = arith.constant 0 : i32
    %c0_i32_0 = arith.constant 0 : i32
    return %arg0, %c0_i32 : i32, i32
  }
  func.func @transform_1(%arg0: i32, %arg1: i32) -> (i32, i32) {
    %c0_i32 = arith.constant 0 : i32
    %c0_i32_0 = arith.constant 0 : i32
    return %c0_i32, %arg1 : i32, i32
  }
  func.func @transform_2(%arg0: i32, %arg1: i32) -> (i32, i32) {
    %c0_i32 = arith.constant 0 : i32
    %c0_i32_0 = arith.constant 0 : i32
    return %c0_i32, %arg1 : i32, i32
  }
  func.func @transform_3(%arg0: i32, %arg1: i32) -> (i32, i32) {
    %c0_i32 = arith.constant 0 : i32
    %c0_i32_0 = arith.constant 0 : i32
    return %arg1, %c0_i32 : i32, i32
  }
  func.func @transform_4(%arg0: i32, %arg1: i32) -> (i32, i32) {
    %c0_i32 = arith.constant 0 : i32
    %c0_i32_0 = arith.constant 0 : i32
    %c0_i32_1 = arith.constant 0 : i32
    return %c0_i32, %c0_i32_0 : i32, i32
  }
  func.func @transform_5(%arg0: i32, %arg1: i32) -> (i32, i32) {
    %c0_i32 = arith.constant 0 : i32
    %c0_i32_0 = arith.constant 0 : i32
    return %arg0, %c0_i32 : i32, i32
  }
}

</mosaic_0001>

<llo_original>
// kernel: mlp_forward.1
$region0: #{mlp_forward.1}
  #allocation0 [shape = 'u32[]', space=smem, size = 0x4, offset = 0x4, fixed_abs, tag = 'smem constant byte address 0x4 - core index']
  #allocation1 [shape = 'u32[144,128]{1,0:T(1,128)}', space=vmem, size = 0x12000, scoped, tag = 'internal scratch']
  #allocation2 [shape = 'f32[256,256]{1,0:T(8,128)}', space=vmem, size = 0x40000, scoped, tag = 'scratch operand']
  %s0 = inlined_call_operand.hbm [shape: f32[512,256], index: 0, kind: input, shape index: {}]
  %s1 = inlined_call_operand.hbm [shape: f32[256,512], index: 1, kind: input, shape index: {}]
  %s2 = inlined_call_operand.vmem [shape: f32[1,512], index: 2, kind: input, shape index: {}]
  %s3 = inlined_call_operand.hbm [shape: f32[512,256], index: 3, kind: input, shape index: {}]
  %s4 = inlined_call_operand.vmem [shape: f32[1,256], index: 4, kind: input, shape index: {}]
  %s5 = inlined_call_operand.hbm [shape: f32[512,256], index: 5, kind: output, shape index: {}]
  %s6 = sld [smem:[#allocation0]]
  $region73: #{mlp_forward.1} parent=0
    _
  %s8 = ssub.s32 1, %s6
  %s9 = scalar_select 0, %s8, %s6
  $region1: #{mlp_forward.1} parent=0
    #allocation3 [shape = 'u8[524288]{0}', space=vmem, size = 0x80000, scoped, tag = 'input window, operand 0']
    #allocation4 [shape = 's32[2]{0}', space=sflag, size = 0x8, scoped, tag = 'scoped memory for mlp_forward.1']
    #allocation5 [shape = 's32[2]{0}', space=sflag, size = 0x8, scoped, tag = 'scoped memory for mlp_forward.1']
    #allocation6 [shape = 'u8[524288]{0}', space=vmem, size = 0x80000, scoped, tag = 'input window, operand 1']
    #allocation7 [shape = 's32[2]{0}', space=sflag, size = 0x8, scoped, tag = 'scoped memory for mlp_forward.1']
    #allocation8 [shape = 'u8[524288]{0}', space=vmem, size = 0x80000, scoped, tag = 'input window, operand 3']
    #allocation9 [shape = 'u8[524288]{0}', space=vmem, size = 0x80000, scoped, tag = 'output window, operand 0']
    %10 = vsyncpa [#allocation4], 0
    %s11 = scalar_lea.sflag [#allocation4], 1
    %12 = vsyncpa %s11, 0
    %13 = vsyncpa [#allocation7], 0
    %s14 = scalar_lea.sflag [#allocation7], 1
    %15 = vsyncpa %s14, 0
    %16 = vsyncpa [#allocation5], 0
    %s17 = scalar_lea.sflag [#allocation5], 1
    %18 = vsyncpa %s17, 0
    loop: start=0, step=1, limit=6
    $region2: #{mlp_forward.1} parent=1 // loop_pre_header
      _
    $region3: #{mlp_forward.1} parent=1 // loop_header
      %s20 = sphi 0, %s24
      %p21 = scmp.ge.s32.totalorder %s20, 6
      %s27 = sphi 0, %s39
      %s28 = sphi 0, %s35
      %s29 = sphi 0, %s27
      %s30 = sphi 0, %s28
      %s31 = sphi 0, %s29
      %s32 = sphi 0, %s30
      %s42 = sphi 0, %s44
      %s45 = sphi 0, %s42
      %s46 = sphi 0, %s45
      %s62 = sphi 0, %s46
      %s68 = sphi 0, %s70
      %s71 = sphi 0, %s68
      %s72 = sphi 0, %s71
      %s88 = sphi 0, %s72
      %s94 = sphi 0, %s96
      %s97 = sphi 0, %s94
      %s98 = sphi 0, %s97
      %s114 = sphi 0, %s98
      %s120 = sphi 0, %s122
      %s123 = sphi 0, %s120
      %s124 = sphi 0, %s123
      %s140 = sphi 0, %s124
      %s144 = sphi 0, %s144
      %s146 = sphi 0, %s144
      %s147 = sphi 0, %s146
      %s161 = sphi 0, %s147
      %s167 = sphi 0, %s169
      %s170 = sphi 0, %s167
      %s171 = sphi 0, %s170
      %s187 = sphi 0, %s171
    $region4: #{mlp_forward.1} parent=1 // loop_header_branch
      %23 = sbr.rel (%p21) target = $region8
    $region5: #{mlp_forward.1} parent=1 // loop_body
      %s25 = ssub.s32 %s20, 1
      %s26 = ssub.s32 %s20, 2
      %s33 = sadd.s32 1, %s28
      %p34 = scmp.ge.s32.totalorder %s33, 2
      %s35 = scalar_select %p34, 0, %s33
      %s36 = sadd.s32 1, %s27
      %s37 = scalar_select %p34, %s36, %s27
      %p38 = scmp.ge.s32.totalorder %s37, 2
      %s39 = scalar_select %p38, 0, %s37
      %s40 = ssub.s32 %s27, %s39
      %p41 = scmp.eq.s32.totalorder %s40, 0
      %s43 = sadd.s32 %s42, 1
      %s44 = scalar_select %p41, %s42, %s43
      %p47 = pneg %p41
      %p48 = scmp.eq.s32.totalorder %s20, 3
      %p49 = por %p47, %p48
      %p50 = scmp.ne.s32.totalorder %s42, %s45
      %p51 = scmp.eq.s32.totalorder %s20, 0
      %p52 = por %p50, %p51
      %p53 = scmp.ne.s32.totalorder %s42, %s45
      %p54 = scmp.eq.s32.totalorder %s25, 3
      %p55 = por %p53, %p54
      %p56 = scmp.ne.s32.totalorder %s45, %s46
      %p57 = scmp.eq.s32.totalorder %s25, 0
      %p58 = por %p56, %p57
      %p59 = scmp.ne.s32.totalorder %s45, %s46
      %p60 = scmp.eq.s32.totalorder %s26, 3
      %p61 = por %p59, %p60
      %p63 = scmp.ne.s32.totalorder %s46, %s62
      %p64 = scmp.eq.s32.totalorder %s26, 0
      %p65 = por %p63, %p64
      %s66 = ssub.s32 %s28, %s35
      %p67 = scmp.eq.s32.totalorder %s66, 0
      %s69 = sadd.s32 %s68, 1
      %s70 = scalar_select %p67, %s68, %s69
      %p73 = pneg %p67
      %p74 = scmp.eq.s32.totalorder %s20, 3
      %p75 = por %p73, %p74
      %p76 = scmp.ne.s32.totalorder %s68, %s71
      %p77 = scmp.eq.s32.totalorder %s20, 0
      %p78 = por %p76, %p77
      %p79 = scmp.ne.s32.totalorder %s68, %s71
      %p80 = scmp.eq.s32.totalorder %s25, 3
      %p81 = por %p79, %p80
      %p82 = scmp.ne.s32.totalorder %s71, %s72
      %p83 = scmp.eq.s32.totalorder %s25, 0
      %p84 = por %p82, %p83
      %p85 = scmp.ne.s32.totalorder %s71, %s72
      %p86 = scmp.eq.s32.totalorder %s26, 3
      %p87 = por %p85, %p86
      %p89 = scmp.ne.s32.totalorder %s72, %s88
      %p90 = scmp.eq.s32.totalorder %s26, 0
      %p91 = por %p89, %p90
      %s92 = ssub.s32 %s28, %s35
      %p93 = scmp.eq.s32.totalorder %s92, 0
      %s95 = sadd.s32 %s94, 1
      %s96 = scalar_select %p93, %s94, %s95
      %p99 = pneg %p93
      %p100 = scmp.eq.s32.totalorder %s20, 3
      %p101 = por %p99, %p100
      %p102 = scmp.ne.s32.totalorder %s94, %s97
      %p103 = scmp.eq.s32.totalorder %s20, 0
      %p104 = por %p102, %p103
      %p105 = scmp.ne.s32.totalorder %s94, %s97
      %p106 = scmp.eq.s32.totalorder %s25, 3
      %p107 = por %p105, %p106
      %p108 = scmp.ne.s32.totalorder %s97, %s98
      %p109 = scmp.eq.s32.totalorder %s25, 0
      %p110 = por %p108, %p109
      %p111 = scmp.ne.s32.totalorder %s97, %s98
      %p112 = scmp.eq.s32.totalorder %s26, 3
      %p113 = por %p111, %p112
      %p115 = scmp.ne.s32.totalorder %s98, %s114
      %p116 = scmp.eq.s32.totalorder %s26, 0
      %p117 = por %p115, %p116
      %s118 = ssub.s32 %s28, %s35
      %p119 = scmp.eq.s32.totalorder %s118, 0
      %s121 = sadd.s32 %s120, 1
      %s122 = scalar_select %p119, %s120, %s121
      %p125 = pneg %p119
      %p126 = scmp.eq.s32.totalorder %s20, 3
      %p127 = por %p125, %p126
      %p128 = scmp.ne.s32.totalorder %s120, %s123
      %p129 = scmp.eq.s32.totalorder %s20, 0
      %p130 = por %p128, %p129
      %p131 = scmp.ne.s32.totalorder %s120, %s123
      %p132 = scmp.eq.s32.totalorder %s25, 3
      %p133 = por %p131, %p132
      %p134 = scmp.ne.s32.totalorder %s123, %s124
      %p135 = scmp.eq.s32.totalorder %s25, 0
      %p136 = por %p134, %p135
      %p137 = scmp.ne.s32.totalorder %s123, %s124
      %p138 = scmp.eq.s32.totalorder %s26, 3
      %p139 = por %p137, %p138
      %p141 = scmp.ne.s32.totalorder %s124, %s140
      %p142 = scmp.eq.s32.totalorder %s26, 0
      %p143 = por %p141, %p142
      %s145 = sadd.s32 %s144, 1
      %p148 = scmp.eq.s32.totalorder %s20, 3
      %p149 = scmp.ne.s32.totalorder %s144, %s146
      %p150 = scmp.eq.s32.totalorder %s20, 0
      %p151 = por %p149, %p150
      %p152 = scmp.ne.s32.totalorder %s144, %s146
      %p153 = scmp.eq.s32.totalorder %s25, 3
      %p154 = por %p152, %p153
      %p155 = scmp.ne.s32.totalorder %s146, %s147
      %p156 = scmp.eq.s32.totalorder %s25, 0
      %p157 = por %p155, %p156
      %p158 = scmp.ne.s32.totalorder %s146, %s147
      %p159 = scmp.eq.s32.totalorder %s26, 3
      %p160 = por %p158, %p159
      %p162 = scmp.ne.s32.totalorder %s147, %s161
      %p163 = scmp.eq.s32.totalorder %s26, 0
      %p164 = por %p162, %p163
      %s165 = ssub.s32 %s27, %s39
      %p166 = scmp.eq.s32.totalorder %s165, 0
      %s168 = sadd.s32 %s167, 1
      %s169 = scalar_select %p166, %s167, %s168
      %p172 = pneg %p166
      %p173 = scmp.eq.s32.totalorder %s20, 3
      %p174 = por %p172, %p173
      %p175 = scmp.ne.s32.totalorder %s167, %s170
      %p176 = scmp.eq.s32.totalorder %s20, 0
      %p177 = por %p175, %p176
      %p178 = scmp.ne.s32.totalorder %s167, %s170
      %p179 = scmp.eq.s32.totalorder %s25, 3
      %p180 = por %p178, %p179
      %p181 = scmp.ne.s32.totalorder %s170, %s171
      %p182 = scmp.eq.s32.totalorder %s25, 0
      %p183 = por %p181, %p182
      %p184 = scmp.ne.s32.totalorder %s170, %s171
      %p185 = scmp.eq.s32.totalorder %s26, 3
      %p186 = por %p184, %p185
      %p188 = scmp.ne.s32.totalorder %s171, %s187
      %p189 = scmp.eq.s32.totalorder %s26, 0
      %p190 = por %p188, %p189
      %p191 = scmp.le.s32.totalorder 1, %s20
      %p192 = scmp.lt.s32.totalorder %s20, 5
      %p193 = pnand %p191, %p192
      %p194 = pneg %p193
      // Predicated region
      $region9: #{mlp_forward.1} parent=5 // pred_check
        _
      $region10: #{mlp_forward.1} parent=5 // pred_check_branch
        %196 = sbr.rel (%p193) target = $region12
      $region11: #{mlp_forward.1} parent=5 // pred_region
        %s197 = ssub.s32 %s20, 1
        // Predicated region
        $region13: #{mlp_forward.1} parent=11 // pred_check
          %p198 = pneg %p157
        $region14: #{mlp_forward.1} parent=11 // pred_check_branch
          %200 = sbr.rel (%p198) target = $region16
        $region15: #{mlp_forward.1} parent=11 // pred_region
          _
        $region16: #{mlp_forward.1} parent=11 // pred_fallthru
          _
      $region12: #{mlp_forward.1} parent=5 // pred_fallthru
        _
      %p201 = scmp.lt.s32.totalorder %s20, 4
      // Predicated region
      $region17: #{mlp_forward.1} parent=5 // pred_check
        %p202 = pneg %p201
      $region18: #{mlp_forward.1} parent=5 // pred_check_branch
        %204 = sbr.rel (%p202) target = $region20
      $region19: #{mlp_forward.1} parent=5 // pred_region
        // Predicated region
        $region21: #{mlp_forward.1} parent=19 // pred_check
          %p205 = pneg %p52
        $region22: #{mlp_forward.1} parent=19 // pred_check_branch
          %207 = sbr.rel (%p205) target = $region24
        $region23: #{mlp_forward.1} parent=19 // pred_region
          %s208 = sand.u32 %s42, 1
          %s209 = scalar_lea.sflag [#allocation4], %s208
          %s210 = sand.u32 %s42, 1
          %s211 = smul.addr %s210, 512
          %s212 = scalar_lea.vmem [#allocation3], %s211
          %s213 = smul.u32 32, %s27
          %s215 = ssub.s32 8192, 8192
          %216 = vsyncadd %s209, %s215
          %s217 = smul.addr %s213, 2
          %s218 = smul.addr %s217, 128
          %s219 = scalar_lea.hbm %s0, %s218
          %s220 = sshll.u32 %s212, 4
          %s221 = int_to_ptr.vmem [resolvable:$true] %s220
          %226 = dma.hbm_to_vmem [thread:$0]  %s219, 8192, %s221, %s209, 256, 256, 16
        $region24: #{mlp_forward.1} parent=19 // pred_fallthru
          _
        // Predicated region
        $region25: #{mlp_forward.1} parent=19 // pred_check
          %p227 = pneg %p78
        $region26: #{mlp_forward.1} parent=19 // pred_check_branch
          %229 = sbr.rel (%p227) target = $region28
        $region27: #{mlp_forward.1} parent=19 // pred_region
          %s230 = sand.u32 %s20, 1
          %s231 = scalar_lea.sflag [#allocation7], %s230
          %s232 = sand.u32 %s68, 1
          %s233 = smul.addr %s232, 512
          %s234 = scalar_lea.vmem [#allocation6], %s233
          %s235 = smul.u32 2, %s28
          %s237 = ssub.s32 8192, 8192
          %238 = vsyncadd %s231, %s237
          %s239 = smul.addr %s235, 128
          %s240 = scalar_lea.hbm %s1, %s239
          %s241 = sshll.u32 %s234, 4
          %s242 = int_to_ptr.vmem [resolvable:$true] %s241
          %247 = dma.hbm_to_vmem [thread:$0]  %s240, 8192, %s242, %s231, 512, 256, 16
        $region28: #{mlp_forward.1} parent=19 // pred_fallthru
          _
        // Predicated region
        $region29: #{mlp_forward.1} parent=19 // pred_check
          %p248 = pneg %p104
        $region30: #{mlp_forward.1} parent=19 // pred_check_branch
          %250 = sbr.rel (%p248) target = $region32
        $region31: #{mlp_forward.1} parent=19 // pred_region
          %s251 = smul.u32 2, %s28
          %p252 = scmp.lt.s32.totalorder %s251, 3
          %s253 = scalar_select %p252, %s251, 3
          %s254 = scalar_lea.vmem %s2, %s253
          %s255 = smul.u32 2, %s28
        $region32: #{mlp_forward.1} parent=19 // pred_fallthru
          _
        // Predicated region
        $region33: #{mlp_forward.1} parent=19 // pred_check
          %p256 = pneg %p130
        $region34: #{mlp_forward.1} parent=19 // pred_check_branch
          %258 = sbr.rel (%p256) target = $region36
        $region35: #{mlp_forward.1} parent=19 // pred_region
          %s259 = sand.u32 %s20, 1
          %s260 = scalar_lea.sflag [#allocation7], %s259
          %s261 = sand.u32 %s120, 1
          %s262 = smul.addr %s261, 512
          %s263 = scalar_lea.vmem [#allocation8], %s262
          %s264 = smul.u32 32, %s28
          %s266 = ssub.s32 8192, 8192
          %267 = vsyncadd %s260, %s266
          %s268 = smul.addr %s264, 2
          %s269 = smul.addr %s268, 128
          %s270 = scalar_lea.hbm %s3, %s269
          %s271 = sshll.u32 %s263, 4
          %s272 = int_to_ptr.vmem [resolvable:$true] %s271
          %277 = dma.hbm_to_vmem [thread:$0]  %s270, 8192, %s272, %s260, 256, 256, 16
        $region36: #{mlp_forward.1} parent=19 // pred_fallthru
          _
      $region20: #{mlp_forward.1} parent=5 // pred_fallthru
        _
      %p278 = scmp.le.s32.totalorder 1, %s20
      %p279 = scmp.lt.s32.totalorder %s20, 5
      %p280 = pnand %p278, %p279
      %p281 = pneg %p280
      // Predicated region
      $region37: #{mlp_forward.1} parent=5 // pred_check
        _
      $region38: #{mlp_forward.1} parent=5 // pred_check_branch
        %283 = sbr.rel (%p280) target = $region40
      $region39: #{mlp_forward.1} parent=5 // pred_region
        %s284 = ssub.s32 %s20, 1
        %s285 = sand.u32 %s45, 1
        %s286 = scalar_lea.sflag [#allocation4], %s285
        %s287 = sand.u32 %s45, 1
        %s288 = smul.addr %s287, 512
        %s289 = scalar_lea.vmem [#allocation3], %s288
        // Predicated region
        $region41: #{mlp_forward.1} parent=39 // pred_check
          %p290 = pneg %p58
        $region42: #{mlp_forward.1} parent=39 // pred_check_branch
          %292 = sbr.rel (%p290) target = $region44
        $region43: #{mlp_forward.1} parent=39 // pred_region
          %293 = dma.done %s286, 8192
        $region44: #{mlp_forward.1} parent=39 // pred_fallthru
          _
        %s294 = sand.u32 %s25, 1
        %s295 = scalar_lea.sflag [#allocation7], %s294
        %s296 = sand.u32 %s71, 1
        %s297 = smul.addr %s296, 512
        %s298 = scalar_lea.vmem [#allocation6], %s297
        // Predicated region
        $region45: #{mlp_forward.1} parent=39 // pred_check
          %p299 = pneg %p84
        $region46: #{mlp_forward.1} parent=39 // pred_check_branch
          %301 = sbr.rel (%p299) target = $region48
        $region47: #{mlp_forward.1} parent=39 // pred_region
          %302 = dma.done %s295, 8192
        $region48: #{mlp_forward.1} parent=39 // pred_fallthru
          _
        %s303 = sand.u32 %s25, 1
        %s304 = scalar_lea.sflag [#allocation7], %s303
        %s305 = sand.u32 %s123, 1
        %s306 = smul.addr %s305, 512
        %s307 = scalar_lea.vmem [#allocation8], %s306
        // Predicated region
        $region49: #{mlp_forward.1} parent=39 // pred_check
          %p308 = pneg %p136
        $region50: #{mlp_forward.1} parent=39 // pred_check_branch
          %310 = sbr.rel (%p308) target = $region52
        $region51: #{mlp_forward.1} parent=39 // pred_region
          %311 = dma.done %s304, 8192
        $region52: #{mlp_forward.1} parent=39 // pred_fallthru
          _
        %s312 = sand.u32 %s45, 1
        %s313 = scalar_lea.sflag [#allocation4], %s312
        %s314 = sand.u32 %s45, 1
        %s315 = smul.addr %s314, 512
        %s316 = scalar_lea.vmem [#allocation3], %s315
        %p317 = pneg %p58
        %p318 = pneg %p55
        %s319 = sand.u32 %s25, 1
        %s320 = scalar_lea.sflag [#allocation7], %s319
        %s321 = sand.u32 %s71, 1
        %s322 = smul.addr %s321, 512
        %s323 = scalar_lea.vmem [#allocation6], %s322
        %p324 = pneg %p84
        %p325 = pneg %p81
        %s326 = smul.u32 2, %s30
        %p327 = scmp.lt.s32.totalorder %s326, 3
        %s328 = scalar_select %p327, %s326, 3
        %s329 = scalar_lea.vmem %s2, %s328
        %p330 = pneg %p110
        %p331 = pneg %p107
        %s332 = sand.u32 %s25, 1
        %s333 = scalar_lea.sflag [#allocation7], %s332
        %s334 = sand.u32 %s123, 1
        %s335 = smul.addr %s334, 512
        %s336 = scalar_lea.vmem [#allocation8], %s335
        %p337 = pneg %p136
        %p338 = pneg %p133
        %p339 = pneg %p157
        %p340 = pneg %p154
        %p341 = pneg %p183
        %p342 = pneg %p180
        %s343 = sand.u32 %s170, 1
        %s344 = scalar_lea.sflag [#allocation5], %s343
        %s345 = sand.u32 %s170, 1
        %s346 = smul.addr %s345, 512
        %s347 = scalar_lea.vmem [#allocation9], %s346
        %s348 = smul.u32 32, %s29
        %s349 = smul.u32 2, %s30
        %s350 = smul.u32 2, %s30
        %p351 = scmp.lt.s32.totalorder %s350, 3
        %s352 = scalar_select %p351, %s350, 3
        %s353 = scalar_lea.vmem %s2, %s352
        %s354 = smul.u32 2, %s30
        %s355 = smul.u32 32, %s30
        %s356 = smul.u32 32, %s29
        %p357 = scmp.eq.s32.totalorder %s30, 0
        // Predicated region
        $region53: #{mlp_forward.1} parent=39 // pred_check
          %p358 = pneg %p357
        $region54: #{mlp_forward.1} parent=39 // pred_check_branch
          %360 = sbr.rel (%p358) target = $region56
        $region55: #{mlp_forward.1} parent=39 // pred_region
          %361 = vst [vmem:[#allocation2] sm:$0xff] 0.0
          %362 = vst [vmem:[#allocation2 + $0x8] sm:$0xff] 0.0
          %363 = vst [vmem:[#allocation2 + $0x10] sm:$0xff] 0.0
          %364 = vst [vmem:[#allocation2 + $0x18] sm:$0xff] 0.0
          %365 = vst [vmem:[#allocation2 + $0x20] sm:$0xff] 0.0
          %366 = vst [vmem:[#allocation2 + $0x28] sm:$0xff] 0.0
          %367 = vst [vmem:[#allocation2 + $0x30] sm:$0xff] 0.0
          %368 = vst [vmem:[#allocation2 + $0x38] sm:$0xff] 0.0
          %369 = vst [vmem:[#allocation2 + $0x40] sm:$0xff] 0.0
          %370 = vst [vmem:[#allocation2 + $0x48] sm:$0xff] 0.0
          %371 = vst [vmem:[#allocation2 + $0x50] sm:$0xff] 0.0
          %372 = vst [vmem:[#allocation2 + $0x58] sm:$0xff] 0.0
          %373 = vst [vmem:[#allocation2 + $0x60] sm:$0xff] 0.0
          %374 = vst [vmem:[#allocation2 + $0x68] sm:$0xff] 0.0
          %375 = vst [vmem:[#allocation2 + $0x70] sm:$0xff] 0.0
          %376 = vst [vmem:[#allocation2 + $0x78] sm:$0xff] 0.0
          %377 = vst [vmem:[#allocation2 + $0x80] sm:$0xff] 0.0
          %378 = vst [vmem:[#allocation2 + $0x88] sm:$0xff] 0.0
          %379 = vst [vmem:[#allocation2 + $0x90] sm:$0xff] 0.0
          %380 = vst [vmem:[#allocation2 + $0x98] sm:$0xff] 0.0
          %381 = vst [vmem:[#allocation2 + $0xa0] sm:$0xff] 0.0
          %382 = vst [vmem:[#allocation2 + $0xa8] sm:$0xff] 0.0
          %383 = vst [vmem:[#allocation2 + $0xb0] sm:$0xff] 0.0
          %384 = vst [vmem:[#allocation2 + $0xb8] sm:$0xff] 0.0
          %385 = vst [vmem:[#allocation2 + $0xc0] sm:$0xff] 0.0
          %386 = vst [vmem:[#allocation2 + $0xc8] sm:$0xff] 0.0
          %387 = vst [vmem:[#allocation2 + $0xd0] sm:$0xff] 0.0
          %388 = vst [vmem:[#allocation2 + $0xd8] sm:$0xff] 0.0
          %389 = vst [vmem:[#allocation2 + $0xe0] sm:$0xff] 0.0
          %390 = vst [vmem:[#allocation2 + $0xe8] sm:$0xff] 0.0
          %391 = vst [vmem:[#allocation2 + $0xf0] sm:$0xff] 0.0
          %392 = vst [vmem:[#allocation2 + $0xf8] sm:$0xff] 0.0
          %393 = vst [vmem:[#allocation2 + $0x100] sm:$0xff] 0.0
          %394 = vst [vmem:[#allocation2 + $0x108] sm:$0xff] 0.0
          %395 = vst [vmem:[#allocation2 + $0x110] sm:$0xff] 0.0
          %396 = vst [vmem:[#allocation2 + $0x118] sm:$0xff] 0.0
          %397 = vst [vmem:[#allocation2 + $0x120] sm:$0xff] 0.0
          %398 = vst [vmem:[#allocation2 + $0x128] sm:$0xff] 0.0
          %399 = vst [vmem:[#allocation2 + $0x130] sm:$0xff] 0.0
          %400 = vst [vmem:[#allocation2 + $0x138] sm:$0xff] 0.0
          %401 = vst [vmem:[#allocation2 + $0x140] sm:$0xff] 0.0
          %402 = vst [vmem:[#allocation2 + $0x148] sm:$0xff] 0.0
          %403 = vst [vmem:[#allocation2 + $0x150] sm:$0xff] 0.0
          %404 = vst [vmem:[#allocation2 + $0x158] sm:$0xff] 0.0
          %405 = vst [vmem:[#allocation2 + $0x160] sm:$0xff] 0.0
          %406 = vst [vmem:[#allocation2 + $0x168] sm:$0xff] 0.0
          %407 = vst [vmem:[#allocation2 + $0x170] sm:$0xff] 0.0
          %408 = vst [vmem:[#allocation2 + $0x178] sm:$0xff] 0.0
          %409 = vst [vmem:[#allocation2 + $0x180] sm:$0xff] 0.0
          %410 = vst [vmem:[#allocation2 + $0x188] sm:$0xff] 0.0
          %411 = vst [vmem:[#allocation2 + $0x190] sm:$0xff] 0.0
          %412 = vst [vmem:[#allocation2 + $0x198] sm:$0xff] 0.0
          %413 = vst [vmem:[#allocation2 + $0x1a0] sm:$0xff] 0.0
          %414 = vst [vmem:[#allocation2 + $0x1a8] sm:$0xff] 0.0
          %415 = vst [vmem:[#allocation2 + $0x1b0] sm:$0xff] 0.0
          %416 = vst [vmem:[#allocation2 + $0x1b8] sm:$0xff] 0.0
          %417 = vst [vmem:[#allocation2 + $0x1c0] sm:$0xff] 0.0
          %418 = vst [vmem:[#allocation2 + $0x1c8] sm:$0xff] 0.0
          %419 = vst [vmem:[#allocation2 + $0x1d0] sm:$0xff] 0.0
          %420 = vst [vmem:[#allocation2 + $0x1d8] sm:$0xff] 0.0
          %421 = vst [vmem:[#allocation2 + $0x1e0] sm:$0xff] 0.0
          %422 = vst [vmem:[#allocation2 + $0x1e8] sm:$0xff] 0.0
          %423 = vst [vmem:[#allocation2 + $0x1f0] sm:$0xff] 0.0
          %424 = vst [vmem:[#allocation2 + $0x1f8] sm:$0xff] 0.0
        $region56: #{mlp_forward.1} parent=39 // pred_fallthru
          _
        %v425 = vld [vmem:[%s289] sm:$0xff]
        %v426 = vld [vmem:[%s289 + $0x8] sm:$0xff]
        %v427 = vld [vmem:[%s289 + $0x10] sm:$0xff]
        %v428 = vld [vmem:[%s289 + $0x18] sm:$0xff]
        %v429 = vld [vmem:[%s289 + $0x20] sm:$0xff]
        %v430 = vld [vmem:[%s289 + $0x28] sm:$0xff]
        %v431 = vld [vmem:[%s289 + $0x30] sm:$0xff]
        %v432 = vld [vmem:[%s289 + $0x38] sm:$0xff]
        %v433 = vld [vmem:[%s289 + $0x40] sm:$0xff]
        %v434 = vld [vmem:[%s289 + $0x48] sm:$0xff]
        %v435 = vld [vmem:[%s289 + $0x50] sm:$0xff]
        %v436 = vld [vmem:[%s289 + $0x58] sm:$0xff]
        %v437 = vld [vmem:[%s289 + $0x60] sm:$0xff]
        %v438 = vld [vmem:[%s289 + $0x68] sm:$0xff]
        %v439 = vld [vmem:[%s289 + $0x70] sm:$0xff]
        %v440 = vld [vmem:[%s289 + $0x78] sm:$0xff]
        %v441 = vld [vmem:[%s289 + $0x80] sm:$0xff]
        %v442 = vld [vmem:[%s289 + $0x88] sm:$0xff]
        %v443 = vld [vmem:[%s289 + $0x90] sm:$0xff]
        %v444 = vld [vmem:[%s289 + $0x98] sm:$0xff]
        %v445 = vld [vmem:[%s289 + $0xa0] sm:$0xff]
        %v446 = vld [vmem:[%s289 + $0xa8] sm:$0xff]
        %v447 = vld [vmem:[%s289 + $0xb0] sm:$0xff]
        %v448 = vld [vmem:[%s289 + $0xb8] sm:$0xff]
        %v449 = vld [vmem:[%s289 + $0xc0] sm:$0xff]
        %v450 = vld [vmem:[%s289 + $0xc8] sm:$0xff]
        %v451 = vld [vmem:[%s289 + $0xd0] sm:$0xff]
        %v452 = vld [vmem:[%s289 + $0xd8] sm:$0xff]
        %v453 = vld [vmem:[%s289 + $0xe0] sm:$0xff]
        %v454 = vld [vmem:[%s289 + $0xe8] sm:$0xff]
        %v455 = vld [vmem:[%s289 + $0xf0] sm:$0xff]
        %v456 = vld [vmem:[%s289 + $0xf8] sm:$0xff]
        %v457 = vld [vmem:[%s289 + $0x100] sm:$0xff]
        %v458 = vld [vmem:[%s289 + $0x108] sm:$0xff]
        %v459 = vld [vmem:[%s289 + $0x110] sm:$0xff]
        %v460 = vld [vmem:[%s289 + $0x118] sm:$0xff]
        %v461 = vld [vmem:[%s289 + $0x120] sm:$0xff]
        %v462 = vld [vmem:[%s289 + $0x128] sm:$0xff]
        %v463 = vld [vmem:[%s289 + $0x130] sm:$0xff]
        %v464 = vld [vmem:[%s289 + $0x138] sm:$0xff]
        %v465 = vld [vmem:[%s289 + $0x140] sm:$0xff]
        %v466 = vld [vmem:[%s289 + $0x148] sm:$0xff]
        %v467 = vld [vmem:[%s289 + $0x150] sm:$0xff]
        %v468 = vld [vmem:[%s289 + $0x158] sm:$0xff]
        %v469 = vld [vmem:[%s289 + $0x160] sm:$0xff]
        %v470 = vld [vmem:[%s289 + $0x168] sm:$0xff]
        %v471 = vld [vmem:[%s289 + $0x170] sm:$0xff]
        %v472 = vld [vmem:[%s289 + $0x178] sm:$0xff]
        %v473 = vld [vmem:[%s289 + $0x180] sm:$0xff]
        %v474 = vld [vmem:[%s289 + $0x188] sm:$0xff]
        %v475 = vld [vmem:[%s289 + $0x190] sm:$0xff]
        %v476 = vld [vmem:[%s289 + $0x198] sm:$0xff]
        %v477 = vld [vmem:[%s289 + $0x1a0] sm:$0xff]
        %v478 = vld [vmem:[%s289 + $0x1a8] sm:$0xff]
        %v479 = vld [vmem:[%s289 + $0x1b0] sm:$0xff]
        %v480 = vld [vmem:[%s289 + $0x1b8] sm:$0xff]
        %v481 = vld [vmem:[%s289 + $0x1c0] sm:$0xff]
        %v482 = vld [vmem:[%s289 + $0x1c8] sm:$0xff]
        %v483 = vld [vmem:[%s289 + $0x1d0] sm:$0xff]
        %v484 = vld [vmem:[%s289 + $0x1d8] sm:$0xff]
        %v485 = vld [vmem:[%s289 + $0x1e0] sm:$0xff]
        %v486 = vld [vmem:[%s289 + $0x1e8] sm:$0xff]
        %v487 = vld [vmem:[%s289 + $0x1f0] sm:$0xff]
        %v488 = vld [vmem:[%s289 + $0x1f8] sm:$0xff]
        %v489 = vld [vmem:[%s298] sm:$0xff]
        %v490 = vld [vmem:[%s298 + $0x8] sm:$0xff]
        %v491 = vld [vmem:[%s298 + $0x10] sm:$0xff]
        %v492 = vld [vmem:[%s298 + $0x18] sm:$0xff]
        %v493 = vld [vmem:[%s298 + $0x20] sm:$0xff]
        %v494 = vld [vmem:[%s298 + $0x28] sm:$0xff]
        %v495 = vld [vmem:[%s298 + $0x30] sm:$0xff]
        %v496 = vld [vmem:[%s298 + $0x38] sm:$0xff]
        %v497 = vld [vmem:[%s298 + $0x40] sm:$0xff]
        %v498 = vld [vmem:[%s298 + $0x48] sm:$0xff]
        %v499 = vld [vmem:[%s298 + $0x50] sm:$0xff]
        %v500 = vld [vmem:[%s298 + $0x58] sm:$0xff]
        %v501 = vld [vmem:[%s298 + $0x60] sm:$0xff]
        %v502 = vld [vmem:[%s298 + $0x68] sm:$0xff]
        %v503 = vld [vmem:[%s298 + $0x70] sm:$0xff]
        %v504 = vld [vmem:[%s298 + $0x78] sm:$0xff]
        %v505 = vld [vmem:[%s298 + $0x80] sm:$0xff]
        %v506 = vld [vmem:[%s298 + $0x88] sm:$0xff]
        %v507 = vld [vmem:[%s298 + $0x90] sm:$0xff]
        %v508 = vld [vmem:[%s298 + $0x98] sm:$0xff]
        %v509 = vld [vmem:[%s298 + $0xa0] sm:$0xff]
        %v510 = vld [vmem:[%s298 + $0xa8] sm:$0xff]
        %v511 = vld [vmem:[%s298 + $0xb0] sm:$0xff]
        %v512 = vld [vmem:[%s298 + $0xb8] sm:$0xff]
        %v513 = vld [vmem:[%s298 + $0xc0] sm:$0xff]
        %v514 = vld [vmem:[%s298 + $0xc8] sm:$0xff]
        %v515 = vld [vmem:[%s298 + $0xd0] sm:$0xff]
        %v516 = vld [vmem:[%s298 + $0xd8] sm:$0xff]
        %v517 = vld [vmem:[%s298 + $0xe0] sm:$0xff]
        %v518 = vld [vmem:[%s298 + $0xe8] sm:$0xff]
        %v519 = vld [vmem:[%s298 + $0xf0] sm:$0xff]
        %v520 = vld [vmem:[%s298 + $0xf8] sm:$0xff]
        %v521 = vld [vmem:[%s298 + $0x100] sm:$0xff]
        %v522 = vld [vmem:[%s298 + $0x108] sm:$0xff]
        %v523 = vld [vmem:[%s298 + $0x110] sm:$0xff]
        %v524 = vld [vmem:[%s298 + $0x118] sm:$0xff]
        %v525 = vld [vmem:[%s298 + $0x120] sm:$0xff]
        %v526 = vld [vmem:[%s298 + $0x128] sm:$0xff]
        %v527 = vld [vmem:[%s298 + $0x130] sm:$0xff]
        %v528 = vld [vmem:[%s298 + $0x138] sm:$0xff]
        %v529 = vld [vmem:[%s298 + $0x140] sm:$0xff]
        %v530 = vld [vmem:[%s298 + $0x148] sm:$0xff]
        %v531 = vld [vmem:[%s298 + $0x150] sm:$0xff]
        %v532 = vld [vmem:[%s298 + $0x158] sm:$0xff]
        %v533 = vld [vmem:[%s298 + $0x160] sm:$0xff]
        %v534 = vld [vmem:[%s298 + $0x168] sm:$0xff]
        %v535 = vld [vmem:[%s298 + $0x170] sm:$0xff]
        %v536 = vld [vmem:[%s298 + $0x178] sm:$0xff]
        %v537 = vld [vmem:[%s298 + $0x180] sm:$0xff]
        %v538 = vld [vmem:[%s298 + $0x188] sm:$0xff]
        %v539 = vld [vmem:[%s298 + $0x190] sm:$0xff]
        %v540 = vld [vmem:[%s298 + $0x198] sm:$0xff]
        %v541 = vld [vmem:[%s298 + $0x1a0] sm:$0xff]
        %v542 = vld [vmem:[%s298 + $0x1a8] sm:$0xff]
        %v543 = vld [vmem:[%s298 + $0x1b0] sm:$0xff]
        %v544 = vld [vmem:[%s298 + $0x1b8] sm:$0xff]
        %v545 = vld [vmem:[%s298 + $0x1c0] sm:$0xff]
        %v546 = vld [vmem:[%s298 + $0x1c8] sm:$0xff]
        %v547 = vld [vmem:[%s298 + $0x1d0] sm:$0xff]
        %v548 = vld [vmem:[%s298 + $0x1d8] sm:$0xff]
        %v549 = vld [vmem:[%s298 + $0x1e0] sm:$0xff]
        %v550 = vld [vmem:[%s298 + $0x1e8] sm:$0xff]
        %v551 = vld [vmem:[%s298 + $0x1f0] sm:$0xff]
        %v552 = vld [vmem:[%s298 + $0x1f8] sm:$0xff]
        %v553 = vld [vmem:[%s353] sm:$0x3]
        %v555 = vlaneseq
        %v556 = vshrl.u32 %v555, 7
        %v557 = vsub.s32 0, %v556
        %v558 = vrot.slane %v553, %v557
        %v559 = vlaneseq
        %v560 = vshrl.u32 %v559, 7
        %v561 = vsub.s32 1, %v560
        %v562 = vrot.slane %v553, %v561
        %565 = vmatprep.subr.mxu0 %v520
        %566 = vmatpush1.msra.mxu0 %v519
        %567 = vmatprep.subr.mxu0 %v518
        %568 = vmatpush1.msra.mxu0 %v517
        %569 = vmatprep.subr.mxu0 %v516
        %570 = vmatpush1.msra.mxu0 %v515
        %571 = vmatprep.subr.mxu0 %v514
        %572 = vmatpush1.msra.mxu0 %v513
        %573 = vmatprep.subr.mxu0 %v512
        %574 = vmatpush1.msra.mxu0 %v511
        %575 = vmatprep.subr.mxu0 %v510
        %576 = vmatpush1.msra.mxu0 %v509
        %577 = vmatprep.subr.mxu0 %v508
        %578 = vmatpush1.msra.mxu0 %v507
        %579 = vmatprep.subr.mxu0 %v506
        %580 = vmatpush1.msra.mxu0 %v505
        %581 = vmatprep.subr.mxu0 %v504
        %582 = vmatpush1.msra.mxu0 %v503
        %583 = vmatprep.subr.mxu0 %v502
        %584 = vmatpush1.msra.mxu0 %v501
        %585 = vmatprep.subr.mxu0 %v500
        %586 = vmatpush1.msra.mxu0 %v499
        %587 = vmatprep.subr.mxu0 %v498
        %588 = vmatpush1.msra.mxu0 %v497
        %589 = vmatprep.subr.mxu0 %v496
        %590 = vmatpush1.msra.mxu0 %v495
        %591 = vmatprep.subr.mxu0 %v494
        %592 = vmatpush1.msra.mxu0 %v493
        %593 = vmatprep.subr.mxu0 %v492
        %594 = vmatpush1.msra.mxu0 %v491
        %595 = vmatprep.subr.mxu0 %v490
        %596 = vmatpush1.msra.mxu0 %v489
        %597 = vmatprep.subr.mxu0 %v552
        %598 = vmatpush2.msra.mxu0 %v551
        %599 = vmatprep.subr.mxu0 %v550
        %600 = vmatpush2.msra.mxu0 %v549
        %601 = vmatprep.subr.mxu0 %v548
        %602 = vmatpush2.msra.mxu0 %v547
        %603 = vmatprep.subr.mxu0 %v546
        %604 = vmatpush2.msra.mxu0 %v545
        %605 = vmatprep.subr.mxu0 %v544
        %606 = vmatpush2.msra.mxu0 %v543
        %607 = vmatprep.subr.mxu0 %v542
        %608 = vmatpush2.msra.mxu0 %v541
        %609 = vmatprep.subr.mxu0 %v540
        %610 = vmatpush2.msra.mxu0 %v539
        %611 = vmatprep.subr.mxu0 %v538
        %612 = vmatpush2.msra.mxu0 %v537
        %613 = vmatprep.subr.mxu0 %v536
        %614 = vmatpush2.msra.mxu0 %v535
        %615 = vmatprep.subr.mxu0 %v534
        %616 = vmatpush2.msra.mxu0 %v533
        %617 = vmatprep.subr.mxu0 %v532
        %618 = vmatpush2.msra.mxu0 %v531
        %619 = vmatprep.subr.mxu0 %v530
        %620 = vmatpush2.msra.mxu0 %v529
        %621 = vmatprep.subr.mxu0 %v528
        %622 = vmatpush2.msra.mxu0 %v527
        %623 = vmatprep.subr.mxu0 %v526
        %624 = vmatpush2.msra.mxu0 %v525
        %625 = vmatprep.subr.mxu0 %v524
        %626 = vmatpush2.msra.mxu0 %v523
        %627 = vmatprep.subr.mxu0 %v522
        %628 = vmatpush2.msra.mxu0 %v521
        %629 = vmatprep.mubr.f32.mxu0 %v426
        %630 = vmatmul.mubr.f32.gmra.mxu0 %v425
        %v631 = vpop.f32.mrf.mxu0
        %v632 = vadd.f32 %v558, %v631
        %v633 = vpop.f32.mrf.mxu0
        %v634 = vadd.f32 %v562, %v633
        %635 = vmatprep.mubr.f32.mxu0 %v428
        %636 = vmatmul.mubr.f32.gmra.mxu0 %v427
        %v637 = vpop.f32.mrf.mxu0
        %v638 = vadd.f32 %v558, %v637
        %v639 = vpop.f32.mrf.mxu0
        %v640 = vadd.f32 %v562, %v639
        %641 = vmatprep.mubr.f32.mxu0 %v430
        %642 = vmatmul.mubr.f32.gmra.mxu0 %v429
        %v643 = vpop.f32.mrf.mxu0
        %v644 = vadd.f32 %v558, %v643
        %v645 = vpop.f32.mrf.mxu0
        %v646 = vadd.f32 %v562, %v645
        %647 = vmatprep.mubr.f32.mxu0 %v432
        %648 = vmatmul.mubr.f32.gmra.mxu0 %v431
        %v649 = vpop.f32.mrf.mxu0
        %v650 = vadd.f32 %v558, %v649
        %v651 = vpop.f32.mrf.mxu0
        %v652 = vadd.f32 %v562, %v651
        %653 = vmatprep.mubr.f32.mxu0 %v434
        %654 = vmatmul.mubr.f32.gmra.mxu0 %v433
        %v655 = vpop.f32.mrf.mxu0
        %v656 = vadd.f32 %v558, %v655
        %v657 = vpop.f32.mrf.mxu0
        %v658 = vadd.f32 %v562, %v657
        %659 = vmatprep.mubr.f32.mxu0 %v436
        %660 = vmatmul.mubr.f32.gmra.mxu0 %v435
        %v661 = vpop.f32.mrf.mxu0
        %v662 = vadd.f32 %v558, %v661
        %v663 = vpop.f32.mrf.mxu0
        %v664 = vadd.f32 %v562, %v663
        %665 = vmatprep.mubr.f32.mxu0 %v438
        %666 = vmatmul.mubr.f32.gmra.mxu0 %v437
        %v667 = vpop.f32.mrf.mxu0
        %v668 = vadd.f32 %v558, %v667
        %v669 = vpop.f32.mrf.mxu0
        %v670 = vadd.f32 %v562, %v669
        %671 = vmatprep.mubr.f32.mxu0 %v440
        %672 = vmatmul.mubr.f32.gmra.mxu0 %v439
        %v673 = vpop.f32.mrf.mxu0
        %v674 = vadd.f32 %v558, %v673
        %v675 = vpop.f32.mrf.mxu0
        %v676 = vadd.f32 %v562, %v675
        %677 = vmatprep.mubr.f32.mxu0 %v442
        %678 = vmatmul.mubr.f32.gmra.mxu0 %v441
        %v679 = vpop.f32.mrf.mxu0
        %v680 = vadd.f32 %v558, %v679
        %v681 = vpop.f32.mrf.mxu0
        %v682 = vadd.f32 %v562, %v681
        %683 = vmatprep.mubr.f32.mxu0 %v444
        %684 = vmatmul.mubr.f32.gmra.mxu0 %v443
        %v685 = vpop.f32.mrf.mxu0
        %v686 = vadd.f32 %v558, %v685
        %v687 = vpop.f32.mrf.mxu0
        %v688 = vadd.f32 %v562, %v687
        %689 = vmatprep.mubr.f32.mxu0 %v446
        %690 = vmatmul.mubr.f32.gmra.mxu0 %v445
        %v691 = vpop.f32.mrf.mxu0
        %v692 = vadd.f32 %v558, %v691
        %v693 = vpop.f32.mrf.mxu0
        %v694 = vadd.f32 %v562, %v693
        %695 = vmatprep.mubr.f32.mxu0 %v448
        %696 = vmatmul.mubr.f32.gmra.mxu0 %v447
        %v697 = vpop.f32.mrf.mxu0
        %v698 = vadd.f32 %v558, %v697
        %v699 = vpop.f32.mrf.mxu0
        %v700 = vadd.f32 %v562, %v699
        %701 = vmatprep.mubr.f32.mxu0 %v450
        %702 = vmatmul.mubr.f32.gmra.mxu0 %v449
        %v703 = vpop.f32.mrf.mxu0
        %v704 = vadd.f32 %v558, %v703
        %v705 = vpop.f32.mrf.mxu0
        %v706 = vadd.f32 %v562, %v705
        %707 = vmatprep.mubr.f32.mxu0 %v452
        %708 = vmatmul.mubr.f32.gmra.mxu0 %v451
        %v709 = vpop.f32.mrf.mxu0
        %v710 = vadd.f32 %v558, %v709
        %v711 = vpop.f32.mrf.mxu0
        %v712 = vadd.f32 %v562, %v711
        %713 = vmatprep.mubr.f32.mxu0 %v454
        %714 = vmatmul.mubr.f32.gmra.mxu0 %v453
        %v715 = vpop.f32.mrf.mxu0
        %v716 = vadd.f32 %v558, %v715
        %v717 = vpop.f32.mrf.mxu0
        %v718 = vadd.f32 %v562, %v717
        %719 = vmatprep.mubr.f32.mxu0 %v456
        %720 = vmatmul.mubr.f32.gmra.mxu0 %v455
        %v721 = vpop.f32.mrf.mxu0
        %v722 = vadd.f32 %v558, %v721
        %v723 = vpop.f32.mrf.mxu0
        %v724 = vadd.f32 %v562, %v723
        %725 = vmatprep.mubr.f32.mxu0 %v458
        %726 = vmatmul.mubr.f32.gmra.mxu0 %v457
        %v727 = vpop.f32.mrf.mxu0
        %v728 = vadd.f32 %v558, %v727
        %v729 = vpop.f32.mrf.mxu0
        %v730 = vadd.f32 %v562, %v729
        %731 = vmatprep.mubr.f32.mxu0 %v460
        %732 = vmatmul.mubr.f32.gmra.mxu0 %v459
        %v733 = vpop.f32.mrf.mxu0
        %v734 = vadd.f32 %v558, %v733
        %v735 = vpop.f32.mrf.mxu0
        %v736 = vadd.f32 %v562, %v735
        %737 = vmatprep.mubr.f32.mxu0 %v462
        %738 = vmatmul.mubr.f32.gmra.mxu0 %v461
        %v739 = vpop.f32.mrf.mxu0
        %v740 = vadd.f32 %v558, %v739
        %v741 = vpop.f32.mrf.mxu0
        %v742 = vadd.f32 %v562, %v741
        %743 = vmatprep.mubr.f32.mxu0 %v464
        %744 = vmatmul.mubr.f32.gmra.mxu0 %v463
        %v745 = vpop.f32.mrf.mxu0
        %v746 = vadd.f32 %v558, %v745
        %v747 = vpop.f32.mrf.mxu0
        %v748 = vadd.f32 %v562, %v747
        %749 = vmatprep.mubr.f32.mxu0 %v466
        %750 = vmatmul.mubr.f32.gmra.mxu0 %v465
        %v751 = vpop.f32.mrf.mxu0
        %v752 = vadd.f32 %v558, %v751
        %v753 = vpop.f32.mrf.mxu0
        %v754 = vadd.f32 %v562, %v753
        %755 = vmatprep.mubr.f32.mxu0 %v468
        %756 = vmatmul.mubr.f32.gmra.mxu0 %v467
        %v757 = vpop.f32.mrf.mxu0
        %v758 = vadd.f32 %v558, %v757
        %v759 = vpop.f32.mrf.mxu0
        %v760 = vadd.f32 %v562, %v759
        %761 = vmatprep.mubr.f32.mxu0 %v470
        %762 = vmatmul.mubr.f32.gmra.mxu0 %v469
        %v763 = vpop.f32.mrf.mxu0
        %v764 = vadd.f32 %v558, %v763
        %v765 = vpop.f32.mrf.mxu0
        %v766 = vadd.f32 %v562, %v765
        %767 = vmatprep.mubr.f32.mxu0 %v472
        %768 = vmatmul.mubr.f32.gmra.mxu0 %v471
        %v769 = vpop.f32.mrf.mxu0
        %v770 = vadd.f32 %v558, %v769
        %v771 = vpop.f32.mrf.mxu0
        %v772 = vadd.f32 %v562, %v771
        %773 = vmatprep.mubr.f32.mxu0 %v474
        %774 = vmatmul.mubr.f32.gmra.mxu0 %v473
        %v775 = vpop.f32.mrf.mxu0
        %v776 = vadd.f32 %v558, %v775
        %v777 = vpop.f32.mrf.mxu0
        %v778 = vadd.f32 %v562, %v777
        %779 = vmatprep.mubr.f32.mxu0 %v476
        %780 = vmatmul.mubr.f32.gmra.mxu0 %v475
        %v781 = vpop.f32.mrf.mxu0
        %v782 = vadd.f32 %v558, %v781
        %v783 = vpop.f32.mrf.mxu0
        %v784 = vadd.f32 %v562, %v783
        %785 = vmatprep.mubr.f32.mxu0 %v478
        %786 = vmatmul.mubr.f32.gmra.mxu0 %v477
        %v787 = vpop.f32.mrf.mxu0
        %v788 = vadd.f32 %v558, %v787
        %v789 = vpop.f32.mrf.mxu0
        %v790 = vadd.f32 %v562, %v789
        %791 = vmatprep.mubr.f32.mxu0 %v480
        %792 = vmatmul.mubr.f32.gmra.mxu0 %v479
        %v793 = vpop.f32.mrf.mxu0
        %v794 = vadd.f32 %v558, %v793
        %v795 = vpop.f32.mrf.mxu0
        %v796 = vadd.f32 %v562, %v795
        %797 = vmatprep.mubr.f32.mxu0 %v482
        %798 = vmatmul.mubr.f32.gmra.mxu0 %v481
        %v799 = vpop.f32.mrf.mxu0
        %v800 = vadd.f32 %v558, %v799
        %v801 = vpop.f32.mrf.mxu0
        %v802 = vadd.f32 %v562, %v801
        %803 = vmatprep.mubr.f32.mxu0 %v484
        %804 = vmatmul.mubr.f32.gmra.mxu0 %v483
        %v805 = vpop.f32.mrf.mxu0
        %v806 = vadd.f32 %v558, %v805
        %v807 = vpop.f32.mrf.mxu0
        %v808 = vadd.f32 %v562, %v807
        %809 = vmatprep.mubr.f32.mxu0 %v486
        %810 = vmatmul.mubr.f32.gmra.mxu0 %v485
        %v811 = vpop.f32.mrf.mxu0
        %v812 = vadd.f32 %v558, %v811
        %v813 = vpop.f32.mrf.mxu0
        %v814 = vadd.f32 %v562, %v813
        %815 = vmatprep.mubr.f32.mxu0 %v488
        %816 = vmatmul.mubr.f32.gmra.mxu0 %v487
        %v817 = vpop.f32.mrf.mxu0
        %v818 = vadd.f32 %v558, %v817
        %v819 = vpop.f32.mrf.mxu0
        %v820 = vadd.f32 %v562, %v819
        %821 = vdwg.mxu0
        %v822 = vmul.f32 %v632, 0.5
        %v823 = vmul.f32 %v634, 0.5
        %v824 = vmul.f32 %v638, 0.5
        %v825 = vmul.f32 %v640, 0.5
        %v826 = vmul.f32 %v644, 0.5
        %v827 = vmul.f32 %v646, 0.5
        %v828 = vmul.f32 %v650, 0.5
        %v829 = vmul.f32 %v652, 0.5
        %v830 = vmul.f32 %v656, 0.5
        %v831 = vmul.f32 %v658, 0.5
        %v832 = vmul.f32 %v662, 0.5
        %v833 = vmul.f32 %v664, 0.5
        %v834 = vmul.f32 %v668, 0.5
        %v835 = vmul.f32 %v670, 0.5
        %v836 = vmul.f32 %v674, 0.5
        %v837 = vmul.f32 %v676, 0.5
        %v838 = vmul.f32 %v680, 0.5
        %v839 = vmul.f32 %v682, 0.5
        %v840 = vmul.f32 %v686, 0.5
        %v841 = vmul.f32 %v688, 0.5
        %v842 = vmul.f32 %v692, 0.5
        %v843 = vmul.f32 %v694, 0.5
        %v844 = vmul.f32 %v698, 0.5
        %v845 = vmul.f32 %v700, 0.5
        %v846 = vmul.f32 %v704, 0.5
        %v847 = vmul.f32 %v706, 0.5
        %v848 = vmul.f32 %v710, 0.5
        %v849 = vmul.f32 %v712, 0.5
        %v850 = vmul.f32 %v716, 0.5
        %v851 = vmul.f32 %v718, 0.5
        %v852 = vmul.f32 %v722, 0.5
        %v853 = vmul.f32 %v724, 0.5
        %v854 = vmul.f32 %v728, 0.5
        %v855 = vmul.f32 %v730, 0.5
        %v856 = vmul.f32 %v734, 0.5
        %v857 = vmul.f32 %v736, 0.5
        %v858 = vmul.f32 %v740, 0.5
        %v859 = vmul.f32 %v742, 0.5
        %v860 = vmul.f32 %v746, 0.5
        %v861 = vmul.f32 %v748, 0.5
        %v862 = vmul.f32 %v752, 0.5
        %v863 = vmul.f32 %v754, 0.5
        %v864 = vmul.f32 %v758, 0.5
        %v865 = vmul.f32 %v760, 0.5
        %v866 = vmul.f32 %v764, 0.5
        %v867 = vmul.f32 %v766, 0.5
        %v868 = vmul.f32 %v770, 0.5
        %v869 = vmul.f32 %v772, 0.5
        %v870 = vmul.f32 %v776, 0.5
        %v871 = vmul.f32 %v778, 0.5
        %v872 = vmul.f32 %v782, 0.5
        %v873 = vmul.f32 %v784, 0.5
        %v874 = vmul.f32 %v788, 0.5
        %v875 = vmul.f32 %v790, 0.5
        %v876 = vmul.f32 %v794, 0.5
        %v877 = vmul.f32 %v796, 0.5
        %v878 = vmul.f32 %v800, 0.5
        %v879 = vmul.f32 %v802, 0.5
        %v880 = vmul.f32 %v806, 0.5
        %v881 = vmul.f32 %v808, 0.5
        %v882 = vmul.f32 %v812, 0.5
        %v883 = vmul.f32 %v814, 0.5
        %v884 = vmul.f32 %v818, 0.5
        %v885 = vmul.f32 %v820, 0.5
        %v886 = vmul.f32 %v632, 0.70710677
        %v887 = vmul.f32 %v634, 0.70710677
        %v888 = vmul.f32 %v638, 0.70710677
        %v889 = vmul.f32 %v640, 0.70710677
        %v890 = vmul.f32 %v644, 0.70710677
        %v891 = vmul.f32 %v646, 0.70710677
        %v892 = vmul.f32 %v650, 0.70710677
        %v893 = vmul.f32 %v652, 0.70710677
        %v894 = vmul.f32 %v656, 0.70710677
        %v895 = vmul.f32 %v658, 0.70710677
        %v896 = vmul.f32 %v662, 0.70710677
        %v897 = vmul.f32 %v664, 0.70710677
        %v898 = vmul.f32 %v668, 0.70710677
        %v899 = vmul.f32 %v670, 0.70710677
        %v900 = vmul.f32 %v674, 0.70710677
        %v901 = vmul.f32 %v676, 0.70710677
        %v902 = vmul.f32 %v680, 0.70710677
        %v903 = vmul.f32 %v682, 0.70710677
        %v904 = vmul.f32 %v686, 0.70710677
        %v905 = vmul.f32 %v688, 0.70710677
        %v906 = vmul.f32 %v692, 0.70710677
        %v907 = vmul.f32 %v694, 0.70710677
        %v908 = vmul.f32 %v698, 0.70710677
        %v909 = vmul.f32 %v700, 0.70710677
        %v910 = vmul.f32 %v704, 0.70710677
        %v911 = vmul.f32 %v706, 0.70710677
        %v912 = vmul.f32 %v710, 0.70710677
        %v913 = vmul.f32 %v712, 0.70710677
        %v914 = vmul.f32 %v716, 0.70710677
        %v915 = vmul.f32 %v718, 0.70710677
        %v916 = vmul.f32 %v722, 0.70710677
        %v917 = vmul.f32 %v724, 0.70710677
        %v918 = vmul.f32 %v728, 0.70710677
        %v919 = vmul.f32 %v730, 0.70710677
        %v920 = vmul.f32 %v734, 0.70710677
        %v921 = vmul.f32 %v736, 0.70710677
        %v922 = vmul.f32 %v740, 0.70710677
        %v923 = vmul.f32 %v742, 0.70710677
        %v924 = vmul.f32 %v746, 0.70710677
        %v925 = vmul.f32 %v748, 0.70710677
        %v926 = vmul.f32 %v752, 0.70710677
        %v927 = vmul.f32 %v754, 0.70710677
        %v928 = vmul.f32 %v758, 0.70710677
        %v929 = vmul.f32 %v760, 0.70710677
        %v930 = vmul.f32 %v764, 0.70710677
        %v931 = vmul.f32 %v766, 0.70710677
        %v932 = vmul.f32 %v770, 0.70710677
        %v933 = vmul.f32 %v772, 0.70710677
        %v934 = vmul.f32 %v776, 0.70710677
        %v935 = vmul.f32 %v778, 0.70710677
        %v936 = vmul.f32 %v782, 0.70710677
        %v937 = vmul.f32 %v784, 0.70710677
        %v938 = vmul.f32 %v788, 0.70710677
        %v939 = vmul.f32 %v790, 0.70710677
        %v940 = vmul.f32 %v794, 0.70710677
        %v941 = vmul.f32 %v796, 0.70710677
        %v942 = vmul.f32 %v800, 0.70710677
        %v943 = vmul.f32 %v802, 0.70710677
        %v944 = vmul.f32 %v806, 0.70710677
        %v945 = vmul.f32 %v808, 0.70710677
        %v946 = vmul.f32 %v812, 0.70710677
        %v947 = vmul.f32 %v814, 0.70710677
        %v948 = vmul.f32 %v818, 0.70710677
        %v949 = vmul.f32 %v820, 0.70710677
        %v950 = verf.f32.pop %v886
        %v951 = verf.f32.pop %v887
        %v952 = verf.f32.pop %v888
        %v953 = verf.f32.pop %v889
        %v954 = verf.f32.pop %v890
        %v955 = verf.f32.pop %v891
        %v956 = verf.f32.pop %v892
        %v957 = verf.f32.pop %v893
        %v958 = verf.f32.pop %v894
        %v959 = verf.f32.pop %v895
        %v960 = verf.f32.pop %v896
        %v961 = verf.f32.pop %v897
        %v962 = verf.f32.pop %v898
        %v963 = verf.f32.pop %v899
        %v964 = verf.f32.pop %v900
        %v965 = verf.f32.pop %v901
        %v966 = verf.f32.pop %v902
        %v967 = verf.f32.pop %v903
        %v968 = verf.f32.pop %v904
        %v969 = verf.f32.pop %v905
        %v970 = verf.f32.pop %v906
        %v971 = verf.f32.pop %v907
        %v972 = verf.f32.pop %v908
        %v973 = verf.f32.pop %v909
        %v974 = verf.f32.pop %v910
        %v975 = verf.f32.pop %v911
        %v976 = verf.f32.pop %v912
        %v977 = verf.f32.pop %v913
        %v978 = verf.f32.pop %v914
        %v979 = verf.f32.pop %v915
        %v980 = verf.f32.pop %v916
        %v981 = verf.f32.pop %v917
        %v982 = verf.f32.pop %v918
        %v983 = verf.f32.pop %v919
        %v984 = verf.f32.pop %v920
        %v985 = verf.f32.pop %v921
        %v986 = verf.f32.pop %v922
        %v987 = verf.f32.pop %v923
        %v988 = verf.f32.pop %v924
        %v989 = verf.f32.pop %v925
        %v990 = verf.f32.pop %v926
        %v991 = verf.f32.pop %v927
        %v992 = verf.f32.pop %v928
        %v993 = verf.f32.pop %v929
        %v994 = verf.f32.pop %v930
        %v995 = verf.f32.pop %v931
        %v996 = verf.f32.pop %v932
        %v997 = verf.f32.pop %v933
        %v998 = verf.f32.pop %v934
        %v999 = verf.f32.pop %v935
        %v1000 = verf.f32.pop %v936
        %v1001 = verf.f32.pop %v937
        %v1002 = verf.f32.pop %v938
        %v1003 = verf.f32.pop %v939
        %v1004 = verf.f32.pop %v940
        %v1005 = verf.f32.pop %v941
        %v1006 = verf.f32.pop %v942
        %v1007 = verf.f32.pop %v943
        %v1008 = verf.f32.pop %v944
        %v1009 = verf.f32.pop %v945
        %v1010 = verf.f32.pop %v946
        %v1011 = verf.f32.pop %v947
        %v1012 = verf.f32.pop %v948
        %v1013 = verf.f32.pop %v949
        %v1014 = vadd.f32 %v950, 1.0
        %v1015 = vadd.f32 %v951, 1.0
        %v1016 = vadd.f32 %v952, 1.0
        %v1017 = vadd.f32 %v953, 1.0
        %v1018 = vadd.f32 %v954, 1.0
        %v1019 = vadd.f32 %v955, 1.0
        %v1020 = vadd.f32 %v956, 1.0
        %v1021 = vadd.f32 %v957, 1.0
        %v1022 = vadd.f32 %v958, 1.0
        %v1023 = vadd.f32 %v959, 1.0
        %v1024 = vadd.f32 %v960, 1.0
        %v1025 = vadd.f32 %v961, 1.0
        %v1026 = vadd.f32 %v962, 1.0
        %v1027 = vadd.f32 %v963, 1.0
        %v1028 = vadd.f32 %v964, 1.0
        %v1029 = vadd.f32 %v965, 1.0
        %v1030 = vadd.f32 %v966, 1.0
        %v1031 = vadd.f32 %v967, 1.0
        %v1032 = vadd.f32 %v968, 1.0
        %v1033 = vadd.f32 %v969, 1.0
        %v1034 = vadd.f32 %v970, 1.0
        %v1035 = vadd.f32 %v971, 1.0
        %v1036 = vadd.f32 %v972, 1.0
        %v1037 = vadd.f32 %v973, 1.0
        %v1038 = vadd.f32 %v974, 1.0
        %v1039 = vadd.f32 %v975, 1.0
        %v1040 = vadd.f32 %v976, 1.0
        %v1041 = vadd.f32 %v977, 1.0
        %v1042 = vadd.f32 %v978, 1.0
        %v1043 = vadd.f32 %v979, 1.0
        %v1044 = vadd.f32 %v980, 1.0
        %v1045 = vadd.f32 %v981, 1.0
        %v1046 = vadd.f32 %v982, 1.0
        %v1047 = vadd.f32 %v983, 1.0
        %v1048 = vadd.f32 %v984, 1.0
        %v1049 = vadd.f32 %v985, 1.0
        %v1050 = vadd.f32 %v986, 1.0
        %v1051 = vadd.f32 %v987, 1.0
        %v1052 = vadd.f32 %v988, 1.0
        %v1053 = vadd.f32 %v989, 1.0
        %v1054 = vadd.f32 %v990, 1.0
        %v1055 = vadd.f32 %v991, 1.0
        %v1056 = vadd.f32 %v992, 1.0
        %v1057 = vadd.f32 %v993, 1.0
        %v1058 = vadd.f32 %v994, 1.0
        %v1059 = vadd.f32 %v995, 1.0
        %v1060 = vadd.f32 %v996, 1.0
        %v1061 = vadd.f32 %v997, 1.0
        %v1062 = vadd.f32 %v998, 1.0
        %v1063 = vadd.f32 %v999, 1.0
        %v1064 = vadd.f32 %v1000, 1.0
        %v1065 = vadd.f32 %v1001, 1.0
        %v1066 = vadd.f32 %v1002, 1.0
        %v1067 = vadd.f32 %v1003, 1.0
        %v1068 = vadd.f32 %v1004, 1.0
        %v1069 = vadd.f32 %v1005, 1.0
        %v1070 = vadd.f32 %v1006, 1.0
        %v1071 = vadd.f32 %v1007, 1.0
        %v1072 = vadd.f32 %v1008, 1.0
        %v1073 = vadd.f32 %v1009, 1.0
        %v1074 = vadd.f32 %v1010, 1.0
        %v1075 = vadd.f32 %v1011, 1.0
        %v1076 = vadd.f32 %v1012, 1.0
        %v1077 = vadd.f32 %v1013, 1.0
        %v1078 = vmul.f32 %v822, %v1014
        %v1079 = vmul.f32 %v823, %v1015
        %v1080 = vmul.f32 %v824, %v1016
        %v1081 = vmul.f32 %v825, %v1017
        %v1082 = vmul.f32 %v826, %v1018
        %v1083 = vmul.f32 %v827, %v1019
        %v1084 = vmul.f32 %v828, %v1020
        %v1085 = vmul.f32 %v829, %v1021
        %v1086 = vmul.f32 %v830, %v1022
        %v1087 = vmul.f32 %v831, %v1023
        %v1088 = vmul.f32 %v832, %v1024
        %v1089 = vmul.f32 %v833, %v1025
        %v1090 = vmul.f32 %v834, %v1026
        %v1091 = vmul.f32 %v835, %v1027
        %v1092 = vmul.f32 %v836, %v1028
        %v1093 = vmul.f32 %v837, %v1029
        %v1094 = vmul.f32 %v838, %v1030
        %v1095 = vmul.f32 %v839, %v1031
        %v1096 = vmul.f32 %v840, %v1032
        %v1097 = vmul.f32 %v841, %v1033
        %v1098 = vmul.f32 %v842, %v1034
        %v1099 = vmul.f32 %v843, %v1035
        %v1100 = vmul.f32 %v844, %v1036
        %v1101 = vmul.f32 %v845, %v1037
        %v1102 = vmul.f32 %v846, %v1038
        %v1103 = vmul.f32 %v847, %v1039
        %v1104 = vmul.f32 %v848, %v1040
        %v1105 = vmul.f32 %v849, %v1041
        %v1106 = vmul.f32 %v850, %v1042
        %v1107 = vmul.f32 %v851, %v1043
        %v1108 = vmul.f32 %v852, %v1044
        %v1109 = vmul.f32 %v853, %v1045
        %v1110 = vmul.f32 %v854, %v1046
        %v1111 = vmul.f32 %v855, %v1047
        %v1112 = vmul.f32 %v856, %v1048
        %v1113 = vmul.f32 %v857, %v1049
        %v1114 = vmul.f32 %v858, %v1050
        %v1115 = vmul.f32 %v859, %v1051
        %v1116 = vmul.f32 %v860, %v1052
        %v1117 = vmul.f32 %v861, %v1053
        %v1118 = vmul.f32 %v862, %v1054
        %v1119 = vmul.f32 %v863, %v1055
        %v1120 = vmul.f32 %v864, %v1056
        %v1121 = vmul.f32 %v865, %v1057
        %v1122 = vmul.f32 %v866, %v1058
        %v1123 = vmul.f32 %v867, %v1059
        %v1124 = vmul.f32 %v868, %v1060
        %v1125 = vmul.f32 %v869, %v1061
        %v1126 = vmul.f32 %v870, %v1062
        %v1127 = vmul.f32 %v871, %v1063
        %v1128 = vmul.f32 %v872, %v1064
        %v1129 = vmul.f32 %v873, %v1065
        %v1130 = vmul.f32 %v874, %v1066
        %v1131 = vmul.f32 %v875, %v1067
        %v1132 = vmul.f32 %v876, %v1068
        %v1133 = vmul.f32 %v877, %v1069
        %v1134 = vmul.f32 %v878, %v1070
        %v1135 = vmul.f32 %v879, %v1071
        %v1136 = vmul.f32 %v880, %v1072
        %v1137 = vmul.f32 %v881, %v1073
        %v1138 = vmul.f32 %v882, %v1074
        %v1139 = vmul.f32 %v883, %v1075
        %v1140 = vmul.f32 %v884, %v1076
        %v1141 = vmul.f32 %v885, %v1077
        %v1142 = vld [vmem:[#allocation2] sm:$0xff]
        %v1143 = vld [vmem:[#allocation2 + $0x8] sm:$0xff]
        %v1144 = vld [vmem:[#allocation2 + $0x10] sm:$0xff]
        %v1145 = vld [vmem:[#allocation2 + $0x18] sm:$0xff]
        %v1146 = vld [vmem:[#allocation2 + $0x20] sm:$0xff]
        %v1147 = vld [vmem:[#allocation2 + $0x28] sm:$0xff]
        %v1148 = vld [vmem:[#allocation2 + $0x30] sm:$0xff]
        %v1149 = vld [vmem:[#allocation2 + $0x38] sm:$0xff]
        %v1150 = vld [vmem:[#allocation2 + $0x40] sm:$0xff]
        %v1151 = vld [vmem:[#allocation2 + $0x48] sm:$0xff]
        %v1152 = vld [vmem:[#allocation2 + $0x50] sm:$0xff]
        %v1153 = vld [vmem:[#allocation2 + $0x58] sm:$0xff]
        %v1154 = vld [vmem:[#allocation2 + $0x60] sm:$0xff]
        %v1155 = vld [vmem:[#allocation2 + $0x68] sm:$0xff]
        %v1156 = vld [vmem:[#allocation2 + $0x70] sm:$0xff]
        %v1157 = vld [vmem:[#allocation2 + $0x78] sm:$0xff]
        %v1158 = vld [vmem:[#allocation2 + $0x80] sm:$0xff]
        %v1159 = vld [vmem:[#allocation2 + $0x88] sm:$0xff]
        %v1160 = vld [vmem:[#allocation2 + $0x90] sm:$0xff]
        %v1161 = vld [vmem:[#allocation2 + $0x98] sm:$0xff]
        %v1162 = vld [vmem:[#allocation2 + $0xa0] sm:$0xff]
        %v1163 = vld [vmem:[#allocation2 + $0xa8] sm:$0xff]
        %v1164 = vld [vmem:[#allocation2 + $0xb0] sm:$0xff]
        %v1165 = vld [vmem:[#allocation2 + $0xb8] sm:$0xff]
        %v1166 = vld [vmem:[#allocation2 + $0xc0] sm:$0xff]
        %v1167 = vld [vmem:[#allocation2 + $0xc8] sm:$0xff]
        %v1168 = vld [vmem:[#allocation2 + $0xd0] sm:$0xff]
        %v1169 = vld [vmem:[#allocation2 + $0xd8] sm:$0xff]
        %v1170 = vld [vmem:[#allocation2 + $0xe0] sm:$0xff]
        %v1171 = vld [vmem:[#allocation2 + $0xe8] sm:$0xff]
        %v1172 = vld [vmem:[#allocation2 + $0xf0] sm:$0xff]
        %v1173 = vld [vmem:[#allocation2 + $0xf8] sm:$0xff]
        %v1174 = vld [vmem:[#allocation2 + $0x100] sm:$0xff]
        %v1175 = vld [vmem:[#allocation2 + $0x108] sm:$0xff]
        %v1176 = vld [vmem:[#allocation2 + $0x110] sm:$0xff]
        %v1177 = vld [vmem:[#allocation2 + $0x118] sm:$0xff]
        %v1178 = vld [vmem:[#allocation2 + $0x120] sm:$0xff]
        %v1179 = vld [vmem:[#allocation2 + $0x128] sm:$0xff]
        %v1180 = vld [vmem:[#allocation2 + $0x130] sm:$0xff]
        %v1181 = vld [vmem:[#allocation2 + $0x138] sm:$0xff]
        %v1182 = vld [vmem:[#allocation2 + $0x140] sm:$0xff]
        %v1183 = vld [vmem:[#allocation2 + $0x148] sm:$0xff]
        %v1184 = vld [vmem:[#allocation2 + $0x150] sm:$0xff]
        %v1185 = vld [vmem:[#allocation2 + $0x158] sm:$0xff]
        %v1186 = vld [vmem:[#allocation2 + $0x160] sm:$0xff]
        %v1187 = vld [vmem:[#allocation2 + $0x168] sm:$0xff]
        %v1188 = vld [vmem:[#allocation2 + $0x170] sm:$0xff]
        %v1189 = vld [vmem:[#allocation2 + $0x178] sm:$0xff]
        %v1190 = vld [vmem:[#allocation2 + $0x180] sm:$0xff]
        %v1191 = vld [vmem:[#allocation2 + $0x188] sm:$0xff]
        %v1192 = vld [vmem:[#allocation2 + $0x190] sm:$0xff]
        %v1193 = vld [vmem:[#allocation2 + $0x198] sm:$0xff]
        %v1194 = vld [vmem:[#allocation2 + $0x1a0] sm:$0xff]
        %v1195 = vld [vmem:[#allocation2 + $0x1a8] sm:$0xff]
        %v1196 = vld [vmem:[#allocation2 + $0x1b0] sm:$0xff]
        %v1197 = vld [vmem:[#allocation2 + $0x1b8] sm:$0xff]
        %v1198 = vld [vmem:[#allocation2 + $0x1c0] sm:$0xff]
        %v1199 = vld [vmem:[#allocation2 + $0x1c8] sm:$0xff]
        %v1200 = vld [vmem:[#allocation2 + $0x1d0] sm:$0xff]
        %v1201 = vld [vmem:[#allocation2 + $0x1d8] sm:$0xff]
        %v1202 = vld [vmem:[#allocation2 + $0x1e0] sm:$0xff]
        %v1203 = vld [vmem:[#allocation2 + $0x1e8] sm:$0xff]
        %v1204 = vld [vmem:[#allocation2 + $0x1f0] sm:$0xff]
        %v1205 = vld [vmem:[#allocation2 + $0x1f8] sm:$0xff]
        %v1206 = vld [vmem:[%s307] sm:$0xff]
        %v1207 = vld [vmem:[%s307 + $0x8] sm:$0xff]
        %v1208 = vld [vmem:[%s307 + $0x10] sm:$0xff]
        %v1209 = vld [vmem:[%s307 + $0x18] sm:$0xff]
        %v1210 = vld [vmem:[%s307 + $0x20] sm:$0xff]
        %v1211 = vld [vmem:[%s307 + $0x28] sm:$0xff]
        %v1212 = vld [vmem:[%s307 + $0x30] sm:$0xff]
        %v1213 = vld [vmem:[%s307 + $0x38] sm:$0xff]
        %v1214 = vld [vmem:[%s307 + $0x40] sm:$0xff]
        %v1215 = vld [vmem:[%s307 + $0x48] sm:$0xff]
        %v1216 = vld [vmem:[%s307 + $0x50] sm:$0xff]
        %v1217 = vld [vmem:[%s307 + $0x58] sm:$0xff]
        %v1218 = vld [vmem:[%s307 + $0x60] sm:$0xff]
        %v1219 = vld [vmem:[%s307 + $0x68] sm:$0xff]
        %v1220 = vld [vmem:[%s307 + $0x70] sm:$0xff]
        %v1221 = vld [vmem:[%s307 + $0x78] sm:$0xff]
        %v1222 = vld [vmem:[%s307 + $0x80] sm:$0xff]
        %v1223 = vld [vmem:[%s307 + $0x88] sm:$0xff]
        %v1224 = vld [vmem:[%s307 + $0x90] sm:$0xff]
        %v1225 = vld [vmem:[%s307 + $0x98] sm:$0xff]
        %v1226 = vld [vmem:[%s307 + $0xa0] sm:$0xff]
        %v1227 = vld [vmem:[%s307 + $0xa8] sm:$0xff]
        %v1228 = vld [vmem:[%s307 + $0xb0] sm:$0xff]
        %v1229 = vld [vmem:[%s307 + $0xb8] sm:$0xff]
        %v1230 = vld [vmem:[%s307 + $0xc0] sm:$0xff]
        %v1231 = vld [vmem:[%s307 + $0xc8] sm:$0xff]
        %v1232 = vld [vmem:[%s307 + $0xd0] sm:$0xff]
        %v1233 = vld [vmem:[%s307 + $0xd8] sm:$0xff]
        %v1234 = vld [vmem:[%s307 + $0xe0] sm:$0xff]
        %v1235 = vld [vmem:[%s307 + $0xe8] sm:$0xff]
        %v1236 = vld [vmem:[%s307 + $0xf0] sm:$0xff]
        %v1237 = vld [vmem:[%s307 + $0xf8] sm:$0xff]
        %v1238 = vld [vmem:[%s307 + $0x100] sm:$0xff]
        %v1239 = vld [vmem:[%s307 + $0x108] sm:$0xff]
        %v1240 = vld [vmem:[%s307 + $0x110] sm:$0xff]
        %v1241 = vld [vmem:[%s307 + $0x118] sm:$0xff]
        %v1242 = vld [vmem:[%s307 + $0x120] sm:$0xff]
        %v1243 = vld [vmem:[%s307 + $0x128] sm:$0xff]
        %v1244 = vld [vmem:[%s307 + $0x130] sm:$0xff]
        %v1245 = vld [vmem:[%s307 + $0x138] sm:$0xff]
        %v1246 = vld [vmem:[%s307 + $0x140] sm:$0xff]
        %v1247 = vld [vmem:[%s307 + $0x148] sm:$0xff]
        %v1248 = vld [vmem:[%s307 + $0x150] sm:$0xff]
        %v1249 = vld [vmem:[%s307 + $0x158] sm:$0xff]
        %v1250 = vld [vmem:[%s307 + $0x160] sm:$0xff]
        %v1251 = vld [vmem:[%s307 + $0x168] sm:$0xff]
        %v1252 = vld [vmem:[%s307 + $0x170] sm:$0xff]
        %v1253 = vld [vmem:[%s307 + $0x178] sm:$0xff]
        %v1254 = vld [vmem:[%s307 + $0x180] sm:$0xff]
        %v1255 = vld [vmem:[%s307 + $0x188] sm:$0xff]
        %v1256 = vld [vmem:[%s307 + $0x190] sm:$0xff]
        %v1257 = vld [vmem:[%s307 + $0x198] sm:$0xff]
        %v1258 = vld [vmem:[%s307 + $0x1a0] sm:$0xff]
        %v1259 = vld [vmem:[%s307 + $0x1a8] sm:$0xff]
        %v1260 = vld [vmem:[%s307 + $0x1b0] sm:$0xff]
        %v1261 = vld [vmem:[%s307 + $0x1b8] sm:$0xff]
        %v1262 = vld [vmem:[%s307 + $0x1c0] sm:$0xff]
        %v1263 = vld [vmem:[%s307 + $0x1c8] sm:$0xff]
        %v1264 = vld [vmem:[%s307 + $0x1d0] sm:$0xff]
        %v1265 = vld [vmem:[%s307 + $0x1d8] sm:$0xff]
        %v1266 = vld [vmem:[%s307 + $0x1e0] sm:$0xff]
        %v1267 = vld [vmem:[%s307 + $0x1e8] sm:$0xff]
        %v1268 = vld [vmem:[%s307 + $0x1f0] sm:$0xff]
        %v1269 = vld [vmem:[%s307 + $0x1f8] sm:$0xff]
        %1270 = vmatprep.subr.mxu0 %v1237
        %1271 = vmatpush1.msra.mxu0 %v1236
        %1272 = vmatprep.subr.mxu0 %v1235
        %1273 = vmatpush1.msra.mxu0 %v1234
        %1274 = vmatprep.subr.mxu0 %v1233
        %1275 = vmatpush1.msra.mxu0 %v1232
        %1276 = vmatprep.subr.mxu0 %v1231
        %1277 = vmatpush1.msra.mxu0 %v1230
        %1278 = vmatprep.subr.mxu0 %v1229
        %1279 = vmatpush1.msra.mxu0 %v1228
        %1280 = vmatprep.subr.mxu0 %v1227
        %1281 = vmatpush1.msra.mxu0 %v1226
        %1282 = vmatprep.subr.mxu0 %v1225
        %1283 = vmatpush1.msra.mxu0 %v1224
        %1284 = vmatprep.subr.mxu0 %v1223
        %1285 = vmatpush1.msra.mxu0 %v1222
        %1286 = vmatprep.subr.mxu0 %v1221
        %1287 = vmatpush1.msra.mxu0 %v1220
        %1288 = vmatprep.subr.mxu0 %v1219
        %1289 = vmatpush1.msra.mxu0 %v1218
        %1290 = vmatprep.subr.mxu0 %v1217
        %1291 = vmatpush1.msra.mxu0 %v1216
        %1292 = vmatprep.subr.mxu0 %v1215
        %1293 = vmatpush1.msra.mxu0 %v1214
        %1294 = vmatprep.subr.mxu0 %v1213
        %1295 = vmatpush1.msra.mxu0 %v1212
        %1296 = vmatprep.subr.mxu0 %v1211
        %1297 = vmatpush1.msra.mxu0 %v1210
        %1298 = vmatprep.subr.mxu0 %v1209
        %1299 = vmatpush1.msra.mxu0 %v1208
        %1300 = vmatprep.subr.mxu0 %v1207
        %1301 = vmatpush1.msra.mxu0 %v1206
        %1302 = vmatprep.subr.mxu0 %v1269
        %1303 = vmatpush2.msra.mxu0 %v1268
        %1304 = vmatprep.subr.mxu0 %v1267
        %1305 = vmatpush2.msra.mxu0 %v1266
        %1306 = vmatprep.subr.mxu0 %v1265
        %1307 = vmatpush2.msra.mxu0 %v1264
        %1308 = vmatprep.subr.mxu0 %v1263
        %1309 = vmatpush2.msra.mxu0 %v1262
        %1310 = vmatprep.subr.mxu0 %v1261
        %1311 = vmatpush2.msra.mxu0 %v1260
        %1312 = vmatprep.subr.mxu0 %v1259
        %1313 = vmatpush2.msra.mxu0 %v1258
        %1314 = vmatprep.subr.mxu0 %v1257
        %1315 = vmatpush2.msra.mxu0 %v1256
        %1316 = vmatprep.subr.mxu0 %v1255
        %1317 = vmatpush2.msra.mxu0 %v1254
        %1318 = vmatprep.subr.mxu0 %v1253
        %1319 = vmatpush2.msra.mxu0 %v1252
        %1320 = vmatprep.subr.mxu0 %v1251
        %1321 = vmatpush2.msra.mxu0 %v1250
        %1322 = vmatprep.subr.mxu0 %v1249
        %1323 = vmatpush2.msra.mxu0 %v1248
        %1324 = vmatprep.subr.mxu0 %v1247
        %1325 = vmatpush2.msra.mxu0 %v1246
        %1326 = vmatprep.subr.mxu0 %v1245
        %1327 = vmatpush2.msra.mxu0 %v1244
        %1328 = vmatprep.subr.mxu0 %v1243
        %1329 = vmatpush2.msra.mxu0 %v1242
        %1330 = vmatprep.subr.mxu0 %v1241
        %1331 = vmatpush2.msra.mxu0 %v1240
        %1332 = vmatprep.subr.mxu0 %v1239
        %1333 = vmatpush2.msra.mxu0 %v1238
        %1334 = vmatprep.mubr.f32.mxu0 %v1079
        %1335 = vmatmul.mubr.f32.gmra.mxu0 %v1078
        %v1336 = vpop.f32.mrf.mxu0
        %v1337 = vadd.f32 0.0, %v1336
        %v1338 = vpop.f32.mrf.mxu0
        %v1339 = vadd.f32 0.0, %v1338
        %1340 = vmatprep.mubr.f32.mxu0 %v1081
        %1341 = vmatmul.mubr.f32.gmra.mxu0 %v1080
        %v1342 = vpop.f32.mrf.mxu0
        %v1343 = vadd.f32 0.0, %v1342
        %v1344 = vpop.f32.mrf.mxu0
        %v1345 = vadd.f32 0.0, %v1344
        %1346 = vmatprep.mubr.f32.mxu0 %v1083
        %1347 = vmatmul.mubr.f32.gmra.mxu0 %v1082
        %v1348 = vpop.f32.mrf.mxu0
        %v1349 = vadd.f32 0.0, %v1348
        %v1350 = vpop.f32.mrf.mxu0
        %v1351 = vadd.f32 0.0, %v1350
        %1352 = vmatprep.mubr.f32.mxu0 %v1085
        %1353 = vmatmul.mubr.f32.gmra.mxu0 %v1084
        %v1354 = vpop.f32.mrf.mxu0
        %v1355 = vadd.f32 0.0, %v1354
        %v1356 = vpop.f32.mrf.mxu0
        %v1357 = vadd.f32 0.0, %v1356
        %1358 = vmatprep.mubr.f32.mxu0 %v1087
        %1359 = vmatmul.mubr.f32.gmra.mxu0 %v1086
        %v1360 = vpop.f32.mrf.mxu0
        %v1361 = vadd.f32 0.0, %v1360
        %v1362 = vpop.f32.mrf.mxu0
        %v1363 = vadd.f32 0.0, %v1362
        %1364 = vmatprep.mubr.f32.mxu0 %v1089
        %1365 = vmatmul.mubr.f32.gmra.mxu0 %v1088
        %v1366 = vpop.f32.mrf.mxu0
        %v1367 = vadd.f32 0.0, %v1366
        %v1368 = vpop.f32.mrf.mxu0
        %v1369 = vadd.f32 0.0, %v1368
        %1370 = vmatprep.mubr.f32.mxu0 %v1091
        %1371 = vmatmul.mubr.f32.gmra.mxu0 %v1090
        %v1372 = vpop.f32.mrf.mxu0
        %v1373 = vadd.f32 0.0, %v1372
        %v1374 = vpop.f32.mrf.mxu0
        %v1375 = vadd.f32 0.0, %v1374
        %1376 = vmatprep.mubr.f32.mxu0 %v1093
        %1377 = vmatmul.mubr.f32.gmra.mxu0 %v1092
        %v1378 = vpop.f32.mrf.mxu0
        %v1379 = vadd.f32 0.0, %v1378
        %v1380 = vpop.f32.mrf.mxu0
        %v1381 = vadd.f32 0.0, %v1380
        %1382 = vmatprep.mubr.f32.mxu0 %v1095
        %1383 = vmatmul.mubr.f32.gmra.mxu0 %v1094
        %v1384 = vpop.f32.mrf.mxu0
        %v1385 = vadd.f32 0.0, %v1384
        %v1386 = vpop.f32.mrf.mxu0
        %v1387 = vadd.f32 0.0, %v1386
        %1388 = vmatprep.mubr.f32.mxu0 %v1097
        %1389 = vmatmul.mubr.f32.gmra.mxu0 %v1096
        %v1390 = vpop.f32.mrf.mxu0
        %v1391 = vadd.f32 0.0, %v1390
        %v1392 = vpop.f32.mrf.mxu0
        %v1393 = vadd.f32 0.0, %v1392
        %1394 = vmatprep.mubr.f32.mxu0 %v1099
        %1395 = vmatmul.mubr.f32.gmra.mxu0 %v1098
        %v1396 = vpop.f32.mrf.mxu0
        %v1397 = vadd.f32 0.0, %v1396
        %v1398 = vpop.f32.mrf.mxu0
        %v1399 = vadd.f32 0.0, %v1398
        %1400 = vmatprep.mubr.f32.mxu0 %v1101
        %1401 = vmatmul.mubr.f32.gmra.mxu0 %v1100
        %v1402 = vpop.f32.mrf.mxu0
        %v1403 = vadd.f32 0.0, %v1402
        %v1404 = vpop.f32.mrf.mxu0
        %v1405 = vadd.f32 0.0, %v1404
        %1406 = vmatprep.mubr.f32.mxu0 %v1103
        %1407 = vmatmul.mubr.f32.gmra.mxu0 %v1102
        %v1408 = vpop.f32.mrf.mxu0
        %v1409 = vadd.f32 0.0, %v1408
        %v1410 = vpop.f32.mrf.mxu0
        %v1411 = vadd.f32 0.0, %v1410
        %1412 = vmatprep.mubr.f32.mxu0 %v1105
        %1413 = vmatmul.mubr.f32.gmra.mxu0 %v1104
        %v1414 = vpop.f32.mrf.mxu0
        %v1415 = vadd.f32 0.0, %v1414
        %v1416 = vpop.f32.mrf.mxu0
        %v1417 = vadd.f32 0.0, %v1416
        %1418 = vmatprep.mubr.f32.mxu0 %v1107
        %1419 = vmatmul.mubr.f32.gmra.mxu0 %v1106
        %v1420 = vpop.f32.mrf.mxu0
        %v1421 = vadd.f32 0.0, %v1420
        %v1422 = vpop.f32.mrf.mxu0
        %v1423 = vadd.f32 0.0, %v1422
        %1424 = vmatprep.mubr.f32.mxu0 %v1109
        %1425 = vmatmul.mubr.f32.gmra.mxu0 %v1108
        %v1426 = vpop.f32.mrf.mxu0
        %v1427 = vadd.f32 0.0, %v1426
        %v1428 = vpop.f32.mrf.mxu0
        %v1429 = vadd.f32 0.0, %v1428
        %1430 = vmatprep.mubr.f32.mxu0 %v1111
        %1431 = vmatmul.mubr.f32.gmra.mxu0 %v1110
        %v1432 = vpop.f32.mrf.mxu0
        %v1433 = vadd.f32 0.0, %v1432
        %v1434 = vpop.f32.mrf.mxu0
        %v1435 = vadd.f32 0.0, %v1434
        %1436 = vmatprep.mubr.f32.mxu0 %v1113
        %1437 = vmatmul.mubr.f32.gmra.mxu0 %v1112
        %v1438 = vpop.f32.mrf.mxu0
        %v1439 = vadd.f32 0.0, %v1438
        %v1440 = vpop.f32.mrf.mxu0
        %v1441 = vadd.f32 0.0, %v1440
        %1442 = vmatprep.mubr.f32.mxu0 %v1115
        %1443 = vmatmul.mubr.f32.gmra.mxu0 %v1114
        %v1444 = vpop.f32.mrf.mxu0
        %v1445 = vadd.f32 0.0, %v1444
        %v1446 = vpop.f32.mrf.mxu0
        %v1447 = vadd.f32 0.0, %v1446
        %1448 = vmatprep.mubr.f32.mxu0 %v1117
        %1449 = vmatmul.mubr.f32.gmra.mxu0 %v1116
        %v1450 = vpop.f32.mrf.mxu0
        %v1451 = vadd.f32 0.0, %v1450
        %v1452 = vpop.f32.mrf.mxu0
        %v1453 = vadd.f32 0.0, %v1452
        %1454 = vmatprep.mubr.f32.mxu0 %v1119
        %1455 = vmatmul.mubr.f32.gmra.mxu0 %v1118
        %v1456 = vpop.f32.mrf.mxu0
        %v1457 = vadd.f32 0.0, %v1456
        %v1458 = vpop.f32.mrf.mxu0
        %v1459 = vadd.f32 0.0, %v1458
        %1460 = vmatprep.mubr.f32.mxu0 %v1121
        %1461 = vmatmul.mubr.f32.gmra.mxu0 %v1120
        %v1462 = vpop.f32.mrf.mxu0
        %v1463 = vadd.f32 0.0, %v1462
        %v1464 = vpop.f32.mrf.mxu0
        %v1465 = vadd.f32 0.0, %v1464
        %1466 = vmatprep.mubr.f32.mxu0 %v1123
        %1467 = vmatmul.mubr.f32.gmra.mxu0 %v1122
        %v1468 = vpop.f32.mrf.mxu0
        %v1469 = vadd.f32 0.0, %v1468
        %v1470 = vpop.f32.mrf.mxu0
        %v1471 = vadd.f32 0.0, %v1470
        %1472 = vmatprep.mubr.f32.mxu0 %v1125
        %1473 = vmatmul.mubr.f32.gmra.mxu0 %v1124
        %v1474 = vpop.f32.mrf.mxu0
        %v1475 = vadd.f32 0.0, %v1474
        %v1476 = vpop.f32.mrf.mxu0
        %v1477 = vadd.f32 0.0, %v1476
        %1478 = vmatprep.mubr.f32.mxu0 %v1127
        %1479 = vmatmul.mubr.f32.gmra.mxu0 %v1126
        %v1480 = vpop.f32.mrf.mxu0
        %v1481 = vadd.f32 0.0, %v1480
        %v1482 = vpop.f32.mrf.mxu0
        %v1483 = vadd.f32 0.0, %v1482
        %1484 = vmatprep.mubr.f32.mxu0 %v1129
        %1485 = vmatmul.mubr.f32.gmra.mxu0 %v1128
        %v1486 = vpop.f32.mrf.mxu0
        %v1487 = vadd.f32 0.0, %v1486
        %v1488 = vpop.f32.mrf.mxu0
        %v1489 = vadd.f32 0.0, %v1488
        %1490 = vmatprep.mubr.f32.mxu0 %v1131
        %1491 = vmatmul.mubr.f32.gmra.mxu0 %v1130
        %v1492 = vpop.f32.mrf.mxu0
        %v1493 = vadd.f32 0.0, %v1492
        %v1494 = vpop.f32.mrf.mxu0
        %v1495 = vadd.f32 0.0, %v1494
        %1496 = vmatprep.mubr.f32.mxu0 %v1133
        %1497 = vmatmul.mubr.f32.gmra.mxu0 %v1132
        %v1498 = vpop.f32.mrf.mxu0
        %v1499 = vadd.f32 0.0, %v1498
        %v1500 = vpop.f32.mrf.mxu0
        %v1501 = vadd.f32 0.0, %v1500
        %1502 = vmatprep.mubr.f32.mxu0 %v1135
        %1503 = vmatmul.mubr.f32.gmra.mxu0 %v1134
        %v1504 = vpop.f32.mrf.mxu0
        %v1505 = vadd.f32 0.0, %v1504
        %v1506 = vpop.f32.mrf.mxu0
        %v1507 = vadd.f32 0.0, %v1506
        %1508 = vmatprep.mubr.f32.mxu0 %v1137
        %1509 = vmatmul.mubr.f32.gmra.mxu0 %v1136
        %v1510 = vpop.f32.mrf.mxu0
        %v1511 = vadd.f32 0.0, %v1510
        %v1512 = vpop.f32.mrf.mxu0
        %v1513 = vadd.f32 0.0, %v1512
        %1514 = vmatprep.mubr.f32.mxu0 %v1139
        %1515 = vmatmul.mubr.f32.gmra.mxu0 %v1138
        %v1516 = vpop.f32.mrf.mxu0
        %v1517 = vadd.f32 0.0, %v1516
        %v1518 = vpop.f32.mrf.mxu0
        %v1519 = vadd.f32 0.0, %v1518
        %1520 = vmatprep.mubr.f32.mxu0 %v1141
        %1521 = vmatmul.mubr.f32.gmra.mxu0 %v1140
        %v1522 = vpop.f32.mrf.mxu0
        %v1523 = vadd.f32 0.0, %v1522
        %v1524 = vpop.f32.mrf.mxu0
        %v1525 = vadd.f32 0.0, %v1524
        %1526 = vdwg.mxu0
        %v1527 = vadd.f32 %v1142, %v1337
        %v1528 = vadd.f32 %v1143, %v1339
        %v1529 = vadd.f32 %v1144, %v1343
        %v1530 = vadd.f32 %v1145, %v1345
        %v1531 = vadd.f32 %v1146, %v1349
        %v1532 = vadd.f32 %v1147, %v1351
        %v1533 = vadd.f32 %v1148, %v1355
        %v1534 = vadd.f32 %v1149, %v1357
        %v1535 = vadd.f32 %v1150, %v1361
        %v1536 = vadd.f32 %v1151, %v1363
        %v1537 = vadd.f32 %v1152, %v1367
        %v1538 = vadd.f32 %v1153, %v1369
        %v1539 = vadd.f32 %v1154, %v1373
        %v1540 = vadd.f32 %v1155, %v1375
        %v1541 = vadd.f32 %v1156, %v1379
        %v1542 = vadd.f32 %v1157, %v1381
        %v1543 = vadd.f32 %v1158, %v1385
        %v1544 = vadd.f32 %v1159, %v1387
        %v1545 = vadd.f32 %v1160, %v1391
        %v1546 = vadd.f32 %v1161, %v1393
        %v1547 = vadd.f32 %v1162, %v1397
        %v1548 = vadd.f32 %v1163, %v1399
        %v1549 = vadd.f32 %v1164, %v1403
        %v1550 = vadd.f32 %v1165, %v1405
        %v1551 = vadd.f32 %v1166, %v1409
        %v1552 = vadd.f32 %v1167, %v1411
        %v1553 = vadd.f32 %v1168, %v1415
        %v1554 = vadd.f32 %v1169, %v1417
        %v1555 = vadd.f32 %v1170, %v1421
        %v1556 = vadd.f32 %v1171, %v1423
        %v1557 = vadd.f32 %v1172, %v1427
        %v1558 = vadd.f32 %v1173, %v1429
        %v1559 = vadd.f32 %v1174, %v1433
        %v1560 = vadd.f32 %v1175, %v1435
        %v1561 = vadd.f32 %v1176, %v1439
        %v1562 = vadd.f32 %v1177, %v1441
        %v1563 = vadd.f32 %v1178, %v1445
        %v1564 = vadd.f32 %v1179, %v1447
        %v1565 = vadd.f32 %v1180, %v1451
        %v1566 = vadd.f32 %v1181, %v1453
        %v1567 = vadd.f32 %v1182, %v1457
        %v1568 = vadd.f32 %v1183, %v1459
        %v1569 = vadd.f32 %v1184, %v1463
        %v1570 = vadd.f32 %v1185, %v1465
        %v1571 = vadd.f32 %v1186, %v1469
        %v1572 = vadd.f32 %v1187, %v1471
        %v1573 = vadd.f32 %v1188, %v1475
        %v1574 = vadd.f32 %v1189, %v1477
        %v1575 = vadd.f32 %v1190, %v1481
        %v1576 = vadd.f32 %v1191, %v1483
        %v1577 = vadd.f32 %v1192, %v1487
        %v1578 = vadd.f32 %v1193, %v1489
        %v1579 = vadd.f32 %v1194, %v1493
        %v1580 = vadd.f32 %v1195, %v1495
        %v1581 = vadd.f32 %v1196, %v1499
        %v1582 = vadd.f32 %v1197, %v1501
        %v1583 = vadd.f32 %v1198, %v1505
        %v1584 = vadd.f32 %v1199, %v1507
        %v1585 = vadd.f32 %v1200, %v1511
        %v1586 = vadd.f32 %v1201, %v1513
        %v1587 = vadd.f32 %v1202, %v1517
        %v1588 = vadd.f32 %v1203, %v1519
        %v1589 = vadd.f32 %v1204, %v1523
        %v1590 = vadd.f32 %v1205, %v1525
        %1591 = vst [vmem:[#allocation2] sm:$0xff] %v1527
        %1592 = vst [vmem:[#allocation2 + $0x8] sm:$0xff] %v1528
        %1593 = vst [vmem:[#allocation2 + $0x10] sm:$0xff] %v1529
        %1594 = vst [vmem:[#allocation2 + $0x18] sm:$0xff] %v1530
        %1595 = vst [vmem:[#allocation2 + $0x20] sm:$0xff] %v1531
        %1596 = vst [vmem:[#allocation2 + $0x28] sm:$0xff] %v1532
        %1597 = vst [vmem:[#allocation2 + $0x30] sm:$0xff] %v1533
        %1598 = vst [vmem:[#allocation2 + $0x38] sm:$0xff] %v1534
        %1599 = vst [vmem:[#allocation2 + $0x40] sm:$0xff] %v1535
        %1600 = vst [vmem:[#allocation2 + $0x48] sm:$0xff] %v1536
        %1601 = vst [vmem:[#allocation2 + $0x50] sm:$0xff] %v1537
        %1602 = vst [vmem:[#allocation2 + $0x58] sm:$0xff] %v1538
        %1603 = vst [vmem:[#allocation2 + $0x60] sm:$0xff] %v1539
        %1604 = vst [vmem:[#allocation2 + $0x68] sm:$0xff] %v1540
        %1605 = vst [vmem:[#allocation2 + $0x70] sm:$0xff] %v1541
        %1606 = vst [vmem:[#allocation2 + $0x78] sm:$0xff] %v1542
        %1607 = vst [vmem:[#allocation2 + $0x80] sm:$0xff] %v1543
        %1608 = vst [vmem:[#allocation2 + $0x88] sm:$0xff] %v1544
        %1609 = vst [vmem:[#allocation2 + $0x90] sm:$0xff] %v1545
        %1610 = vst [vmem:[#allocation2 + $0x98] sm:$0xff] %v1546
        %1611 = vst [vmem:[#allocation2 + $0xa0] sm:$0xff] %v1547
        %1612 = vst [vmem:[#allocation2 + $0xa8] sm:$0xff] %v1548
        %1613 = vst [vmem:[#allocation2 + $0xb0] sm:$0xff] %v1549
        %1614 = vst [vmem:[#allocation2 + $0xb8] sm:$0xff] %v1550
        %1615 = vst [vmem:[#allocation2 + $0xc0] sm:$0xff] %v1551
        %1616 = vst [vmem:[#allocation2 + $0xc8] sm:$0xff] %v1552
        %1617 = vst [vmem:[#allocation2 + $0xd0] sm:$0xff] %v1553
        %1618 = vst [vmem:[#allocation2 + $0xd8] sm:$0xff] %v1554
        %1619 = vst [vmem:[#allocation2 + $0xe0] sm:$0xff] %v1555
        %1620 = vst [vmem:[#allocation2 + $0xe8] sm:$0xff] %v1556
        %1621 = vst [vmem:[#allocation2 + $0xf0] sm:$0xff] %v1557
        %1622 = vst [vmem:[#allocation2 + $0xf8] sm:$0xff] %v1558
        %1623 = vst [vmem:[#allocation2 + $0x100] sm:$0xff] %v1559
        %1624 = vst [vmem:[#allocation2 + $0x108] sm:$0xff] %v1560
        %1625 = vst [vmem:[#allocation2 + $0x110] sm:$0xff] %v1561
        %1626 = vst [vmem:[#allocation2 + $0x118] sm:$0xff] %v1562
        %1627 = vst [vmem:[#allocation2 + $0x120] sm:$0xff] %v1563
        %1628 = vst [vmem:[#allocation2 + $0x128] sm:$0xff] %v1564
        %1629 = vst [vmem:[#allocation2 + $0x130] sm:$0xff] %v1565
        %1630 = vst [vmem:[#allocation2 + $0x138] sm:$0xff] %v1566
        %1631 = vst [vmem:[#allocation2 + $0x140] sm:$0xff] %v1567
        %1632 = vst [vmem:[#allocation2 + $0x148] sm:$0xff] %v1568
        %1633 = vst [vmem:[#allocation2 + $0x150] sm:$0xff] %v1569
        %1634 = vst [vmem:[#allocation2 + $0x158] sm:$0xff] %v1570
        %1635 = vst [vmem:[#allocation2 + $0x160] sm:$0xff] %v1571
        %1636 = vst [vmem:[#allocation2 + $0x168] sm:$0xff] %v1572
        %1637 = vst [vmem:[#allocation2 + $0x170] sm:$0xff] %v1573
        %1638 = vst [vmem:[#allocation2 + $0x178] sm:$0xff] %v1574
        %1639 = vst [vmem:[#allocation2 + $0x180] sm:$0xff] %v1575
        %1640 = vst [vmem:[#allocation2 + $0x188] sm:$0xff] %v1576
        %1641 = vst [vmem:[#allocation2 + $0x190] sm:$0xff] %v1577
        %1642 = vst [vmem:[#allocation2 + $0x198] sm:$0xff] %v1578
        %1643 = vst [vmem:[#allocation2 + $0x1a0] sm:$0xff] %v1579
        %1644 = vst [vmem:[#allocation2 + $0x1a8] sm:$0xff] %v1580
        %1645 = vst [vmem:[#allocation2 + $0x1b0] sm:$0xff] %v1581
        %1646 = vst [vmem:[#allocation2 + $0x1b8] sm:$0xff] %v1582
        %1647 = vst [vmem:[#allocation2 + $0x1c0] sm:$0xff] %v1583
        %1648 = vst [vmem:[#allocation2 + $0x1c8] sm:$0xff] %v1584
        %1649 = vst [vmem:[#allocation2 + $0x1d0] sm:$0xff] %v1585
        %1650 = vst [vmem:[#allocation2 + $0x1d8] sm:$0xff] %v1586
        %1651 = vst [vmem:[#allocation2 + $0x1e0] sm:$0xff] %v1587
        %1652 = vst [vmem:[#allocation2 + $0x1e8] sm:$0xff] %v1588
        %1653 = vst [vmem:[#allocation2 + $0x1f0] sm:$0xff] %v1589
        %1654 = vst [vmem:[#allocation2 + $0x1f8] sm:$0xff] %v1590
        %p1655 = scmp.eq.s32.totalorder %s30, 1
        // Predicated region
        $region57: #{mlp_forward.1} parent=39 // pred_check
          %p1656 = pneg %p1655
        $region58: #{mlp_forward.1} parent=39 // pred_check_branch
          %1658 = sbr.rel (%p1656) target = $region60
        $region59: #{mlp_forward.1} parent=39 // pred_region
          %v1659 = vld [vmem:[#allocation2] sm:$0xff]
          %v1660 = vld [vmem:[#allocation2 + $0x8] sm:$0xff]
          %v1661 = vld [vmem:[#allocation2 + $0x10] sm:$0xff]
          %v1662 = vld [vmem:[#allocation2 + $0x18] sm:$0xff]
          %v1663 = vld [vmem:[#allocation2 + $0x20] sm:$0xff]
          %v1664 = vld [vmem:[#allocation2 + $0x28] sm:$0xff]
          %v1665 = vld [vmem:[#allocation2 + $0x30] sm:$0xff]
          %v1666 = vld [vmem:[#allocation2 + $0x38] sm:$0xff]
          %v1667 = vld [vmem:[#allocation2 + $0x40] sm:$0xff]
          %v1668 = vld [vmem:[#allocation2 + $0x48] sm:$0xff]
          %v1669 = vld [vmem:[#allocation2 + $0x50] sm:$0xff]
          %v1670 = vld [vmem:[#allocation2 + $0x58] sm:$0xff]
          %v1671 = vld [vmem:[#allocation2 + $0x60] sm:$0xff]
          %v1672 = vld [vmem:[#allocation2 + $0x68] sm:$0xff]
          %v1673 = vld [vmem:[#allocation2 + $0x70] sm:$0xff]
          %v1674 = vld [vmem:[#allocation2 + $0x78] sm:$0xff]
          %v1675 = vld [vmem:[#allocation2 + $0x80] sm:$0xff]
          %v1676 = vld [vmem:[#allocation2 + $0x88] sm:$0xff]
          %v1677 = vld [vmem:[#allocation2 + $0x90] sm:$0xff]
          %v1678 = vld [vmem:[#allocation2 + $0x98] sm:$0xff]
          %v1679 = vld [vmem:[#allocation2 + $0xa0] sm:$0xff]
          %v1680 = vld [vmem:[#allocation2 + $0xa8] sm:$0xff]
          %v1681 = vld [vmem:[#allocation2 + $0xb0] sm:$0xff]
          %v1682 = vld [vmem:[#allocation2 + $0xb8] sm:$0xff]
          %v1683 = vld [vmem:[#allocation2 + $0xc0] sm:$0xff]
          %v1684 = vld [vmem:[#allocation2 + $0xc8] sm:$0xff]
          %v1685 = vld [vmem:[#allocation2 + $0xd0] sm:$0xff]
          %v1686 = vld [vmem:[#allocation2 + $0xd8] sm:$0xff]
          %v1687 = vld [vmem:[#allocation2 + $0xe0] sm:$0xff]
          %v1688 = vld [vmem:[#allocation2 + $0xe8] sm:$0xff]
          %v1689 = vld [vmem:[#allocation2 + $0xf0] sm:$0xff]
          %v1690 = vld [vmem:[#allocation2 + $0xf8] sm:$0xff]
          %v1691 = vld [vmem:[#allocation2 + $0x100] sm:$0xff]
          %v1692 = vld [vmem:[#allocation2 + $0x108] sm:$0xff]
          %v1693 = vld [vmem:[#allocation2 + $0x110] sm:$0xff]
          %v1694 = vld [vmem:[#allocation2 + $0x118] sm:$0xff]
          %v1695 = vld [vmem:[#allocation2 + $0x120] sm:$0xff]
          %v1696 = vld [vmem:[#allocation2 + $0x128] sm:$0xff]
          %v1697 = vld [vmem:[#allocation2 + $0x130] sm:$0xff]
          %v1698 = vld [vmem:[#allocation2 + $0x138] sm:$0xff]
          %v1699 = vld [vmem:[#allocation2 + $0x140] sm:$0xff]
          %v1700 = vld [vmem:[#allocation2 + $0x148] sm:$0xff]
          %v1701 = vld [vmem:[#allocation2 + $0x150] sm:$0xff]
          %v1702 = vld [vmem:[#allocation2 + $0x158] sm:$0xff]
          %v1703 = vld [vmem:[#allocation2 + $0x160] sm:$0xff]
          %v1704 = vld [vmem:[#allocation2 + $0x168] sm:$0xff]
          %v1705 = vld [vmem:[#allocation2 + $0x170] sm:$0xff]
          %v1706 = vld [vmem:[#allocation2 + $0x178] sm:$0xff]
          %v1707 = vld [vmem:[#allocation2 + $0x180] sm:$0xff]
          %v1708 = vld [vmem:[#allocation2 + $0x188] sm:$0xff]
          %v1709 = vld [vmem:[#allocation2 + $0x190] sm:$0xff]
          %v1710 = vld [vmem:[#allocation2 + $0x198] sm:$0xff]
          %v1711 = vld [vmem:[#allocation2 + $0x1a0] sm:$0xff]
          %v1712 = vld [vmem:[#allocation2 + $0x1a8] sm:$0xff]
          %v1713 = vld [vmem:[#allocation2 + $0x1b0] sm:$0xff]
          %v1714 = vld [vmem:[#allocation2 + $0x1b8] sm:$0xff]
          %v1715 = vld [vmem:[#allocation2 + $0x1c0] sm:$0xff]
          %v1716 = vld [vmem:[#allocation2 + $0x1c8] sm:$0xff]
          %v1717 = vld [vmem:[#allocation2 + $0x1d0] sm:$0xff]
          %v1718 = vld [vmem:[#allocation2 + $0x1d8] sm:$0xff]
          %v1719 = vld [vmem:[#allocation2 + $0x1e0] sm:$0xff]
          %v1720 = vld [vmem:[#allocation2 + $0x1e8] sm:$0xff]
          %v1721 = vld [vmem:[#allocation2 + $0x1f0] sm:$0xff]
          %v1722 = vld [vmem:[#allocation2 + $0x1f8] sm:$0xff]
          %v1723 = vld [vmem:[%s4] sm:$0x3]
          %v1725 = vlaneseq
          %v1726 = vshrl.u32 %v1725, 7
          %v1727 = vsub.s32 0, %v1726
          %v1728 = vrot.slane %v1723, %v1727
          %v1729 = vlaneseq
          %v1730 = vshrl.u32 %v1729, 7
          %v1731 = vsub.s32 1, %v1730
          %v1732 = vrot.slane %v1723, %v1731
          %v1735 = vadd.f32 %v1659, %v1728
          %v1736 = vadd.f32 %v1660, %v1732
          %v1737 = vadd.f32 %v1661, %v1728
          %v1738 = vadd.f32 %v1662, %v1732
          %v1739 = vadd.f32 %v1663, %v1728
          %v1740 = vadd.f32 %v1664, %v1732
          %v1741 = vadd.f32 %v1665, %v1728
          %v1742 = vadd.f32 %v1666, %v1732
          %v1743 = vadd.f32 %v1667, %v1728
          %v1744 = vadd.f32 %v1668, %v1732
          %v1745 = vadd.f32 %v1669, %v1728
          %v1746 = vadd.f32 %v1670, %v1732
          %v1747 = vadd.f32 %v1671, %v1728
          %v1748 = vadd.f32 %v1672, %v1732
          %v1749 = vadd.f32 %v1673, %v1728
          %v1750 = vadd.f32 %v1674, %v1732
          %v1751 = vadd.f32 %v1675, %v1728
          %v1752 = vadd.f32 %v1676, %v1732
          %v1753 = vadd.f32 %v1677, %v1728
          %v1754 = vadd.f32 %v1678, %v1732
          %v1755 = vadd.f32 %v1679, %v1728
          %v1756 = vadd.f32 %v1680, %v1732
          %v1757 = vadd.f32 %v1681, %v1728
          %v1758 = vadd.f32 %v1682, %v1732
          %v1759 = vadd.f32 %v1683, %v1728
          %v1760 = vadd.f32 %v1684, %v1732
          %v1761 = vadd.f32 %v1685, %v1728
          %v1762 = vadd.f32 %v1686, %v1732
          %v1763 = vadd.f32 %v1687, %v1728
          %v1764 = vadd.f32 %v1688, %v1732
          %v1765 = vadd.f32 %v1689, %v1728
          %v1766 = vadd.f32 %v1690, %v1732
          %v1767 = vadd.f32 %v1691, %v1728
          %v1768 = vadd.f32 %v1692, %v1732
          %v1769 = vadd.f32 %v1693, %v1728
          %v1770 = vadd.f32 %v1694, %v1732
          %v1771 = vadd.f32 %v1695, %v1728
          %v1772 = vadd.f32 %v1696, %v1732
          %v1773 = vadd.f32 %v1697, %v1728
          %v1774 = vadd.f32 %v1698, %v1732
          %v1775 = vadd.f32 %v1699, %v1728
          %v1776 = vadd.f32 %v1700, %v1732
          %v1777 = vadd.f32 %v1701, %v1728
          %v1778 = vadd.f32 %v1702, %v1732
          %v1779 = vadd.f32 %v1703, %v1728
          %v1780 = vadd.f32 %v1704, %v1732
          %v1781 = vadd.f32 %v1705, %v1728
          %v1782 = vadd.f32 %v1706, %v1732
          %v1783 = vadd.f32 %v1707, %v1728
          %v1784 = vadd.f32 %v1708, %v1732
          %v1785 = vadd.f32 %v1709, %v1728
          %v1786 = vadd.f32 %v1710, %v1732
          %v1787 = vadd.f32 %v1711, %v1728
          %v1788 = vadd.f32 %v1712, %v1732
          %v1789 = vadd.f32 %v1713, %v1728
          %v1790 = vadd.f32 %v1714, %v1732
          %v1791 = vadd.f32 %v1715, %v1728
          %v1792 = vadd.f32 %v1716, %v1732
          %v1793 = vadd.f32 %v1717, %v1728
          %v1794 = vadd.f32 %v1718, %v1732
          %v1795 = vadd.f32 %v1719, %v1728
          %v1796 = vadd.f32 %v1720, %v1732
          %v1797 = vadd.f32 %v1721, %v1728
          %v1798 = vadd.f32 %v1722, %v1732
          %1799 = vst [vmem:[%s347] sm:$0xff] %v1735
          %1800 = vst [vmem:[%s347 + $0x8] sm:$0xff] %v1736
          %1801 = vst [vmem:[%s347 + $0x10] sm:$0xff] %v1737
          %1802 = vst [vmem:[%s347 + $0x18] sm:$0xff] %v1738
          %1803 = vst [vmem:[%s347 + $0x20] sm:$0xff] %v1739
          %1804 = vst [vmem:[%s347 + $0x28] sm:$0xff] %v1740
          %1805 = vst [vmem:[%s347 + $0x30] sm:$0xff] %v1741
          %1806 = vst [vmem:[%s347 + $0x38] sm:$0xff] %v1742
          %1807 = vst [vmem:[%s347 + $0x40] sm:$0xff] %v1743
          %1808 = vst [vmem:[%s347 + $0x48] sm:$0xff] %v1744
          %1809 = vst [vmem:[%s347 + $0x50] sm:$0xff] %v1745
          %1810 = vst [vmem:[%s347 + $0x58] sm:$0xff] %v1746
          %1811 = vst [vmem:[%s347 + $0x60] sm:$0xff] %v1747
          %1812 = vst [vmem:[%s347 + $0x68] sm:$0xff] %v1748
          %1813 = vst [vmem:[%s347 + $0x70] sm:$0xff] %v1749
          %1814 = vst [vmem:[%s347 + $0x78] sm:$0xff] %v1750
          %1815 = vst [vmem:[%s347 + $0x80] sm:$0xff] %v1751
          %1816 = vst [vmem:[%s347 + $0x88] sm:$0xff] %v1752
          %1817 = vst [vmem:[%s347 + $0x90] sm:$0xff] %v1753
          %1818 = vst [vmem:[%s347 + $0x98] sm:$0xff] %v1754
          %1819 = vst [vmem:[%s347 + $0xa0] sm:$0xff] %v1755
          %1820 = vst [vmem:[%s347 + $0xa8] sm:$0xff] %v1756
          %1821 = vst [vmem:[%s347 + $0xb0] sm:$0xff] %v1757
          %1822 = vst [vmem:[%s347 + $0xb8] sm:$0xff] %v1758
          %1823 = vst [vmem:[%s347 + $0xc0] sm:$0xff] %v1759
          %1824 = vst [vmem:[%s347 + $0xc8] sm:$0xff] %v1760
          %1825 = vst [vmem:[%s347 + $0xd0] sm:$0xff] %v1761
          %1826 = vst [vmem:[%s347 + $0xd8] sm:$0xff] %v1762
          %1827 = vst [vmem:[%s347 + $0xe0] sm:$0xff] %v1763
          %1828 = vst [vmem:[%s347 + $0xe8] sm:$0xff] %v1764
          %1829 = vst [vmem:[%s347 + $0xf0] sm:$0xff] %v1765
          %1830 = vst [vmem:[%s347 + $0xf8] sm:$0xff] %v1766
          %1831 = vst [vmem:[%s347 + $0x100] sm:$0xff] %v1767
          %1832 = vst [vmem:[%s347 + $0x108] sm:$0xff] %v1768
          %1833 = vst [vmem:[%s347 + $0x110] sm:$0xff] %v1769
          %1834 = vst [vmem:[%s347 + $0x118] sm:$0xff] %v1770
          %1835 = vst [vmem:[%s347 + $0x120] sm:$0xff] %v1771
          %1836 = vst [vmem:[%s347 + $0x128] sm:$0xff] %v1772
          %1837 = vst [vmem:[%s347 + $0x130] sm:$0xff] %v1773
          %1838 = vst [vmem:[%s347 + $0x138] sm:$0xff] %v1774
          %1839 = vst [vmem:[%s347 + $0x140] sm:$0xff] %v1775
          %1840 = vst [vmem:[%s347 + $0x148] sm:$0xff] %v1776
          %1841 = vst [vmem:[%s347 + $0x150] sm:$0xff] %v1777
          %1842 = vst [vmem:[%s347 + $0x158] sm:$0xff] %v1778
          %1843 = vst [vmem:[%s347 + $0x160] sm:$0xff] %v1779
          %1844 = vst [vmem:[%s347 + $0x168] sm:$0xff] %v1780
          %1845 = vst [vmem:[%s347 + $0x170] sm:$0xff] %v1781
          %1846 = vst [vmem:[%s347 + $0x178] sm:$0xff] %v1782
          %1847 = vst [vmem:[%s347 + $0x180] sm:$0xff] %v1783
          %1848 = vst [vmem:[%s347 + $0x188] sm:$0xff] %v1784
          %1849 = vst [vmem:[%s347 + $0x190] sm:$0xff] %v1785
          %1850 = vst [vmem:[%s347 + $0x198] sm:$0xff] %v1786
          %1851 = vst [vmem:[%s347 + $0x1a0] sm:$0xff] %v1787
          %1852 = vst [vmem:[%s347 + $0x1a8] sm:$0xff] %v1788
          %1853 = vst [vmem:[%s347 + $0x1b0] sm:$0xff] %v1789
          %1854 = vst [vmem:[%s347 + $0x1b8] sm:$0xff] %v1790
          %1855 = vst [vmem:[%s347 + $0x1c0] sm:$0xff] %v1791
          %1856 = vst [vmem:[%s347 + $0x1c8] sm:$0xff] %v1792
          %1857 = vst [vmem:[%s347 + $0x1d0] sm:$0xff] %v1793
          %1858 = vst [vmem:[%s347 + $0x1d8] sm:$0xff] %v1794
          %1859 = vst [vmem:[%s347 + $0x1e0] sm:$0xff] %v1795
          %1860 = vst [vmem:[%s347 + $0x1e8] sm:$0xff] %v1796
          %1861 = vst [vmem:[%s347 + $0x1f0] sm:$0xff] %v1797
          %1862 = vst [vmem:[%s347 + $0x1f8] sm:$0xff] %v1798
        $region60: #{mlp_forward.1} parent=39 // pred_fallthru
          _
        %s1863 = sand.u32 %s170, 1
        %s1864 = scalar_lea.sflag [#allocation5], %s1863
        %s1865 = sand.u32 %s170, 1
        %s1866 = smul.addr %s1865, 512
        %s1867 = scalar_lea.vmem [#allocation9], %s1866
        // Predicated region
        $region61: #{mlp_forward.1} parent=39 // pred_check
          %p1868 = pneg %p180
        $region62: #{mlp_forward.1} parent=39 // pred_check_branch
          %1870 = sbr.rel (%p1868) target = $region64
        $region63: #{mlp_forward.1} parent=39 // pred_region
          %s1871 = smul.u32 32, %s29
          %s1873 = ssub.s32 8192, 8192
          %1874 = vsyncadd %s1864, %s1873
          %s1875 = smul.addr %s1871, 2
          %s1876 = smul.addr %s1875, 128
          %s1877 = scalar_lea.hbm %s5, %s1876
          %s1878 = sshll.u32 %s1867, 4
          %s1879 = int_to_ptr.vmem [resolvable:$true] %s1878
          %1884 = dma.vmem_to_hbm [thread:$0]  %s1879, 8192, %s1877, %s1864, 256, 256, 16
        $region64: #{mlp_forward.1} parent=39 // pred_fallthru
          _
      $region40: #{mlp_forward.1} parent=5 // pred_fallthru
        _
      %p1885 = scmp.le.s32.totalorder 2, %s20
      // Predicated region
      $region65: #{mlp_forward.1} parent=5 // pred_check
        %p1886 = pneg %p1885
      $region66: #{mlp_forward.1} parent=5 // pred_check_branch
        %1888 = sbr.rel (%p1886) target = $region68
      $region67: #{mlp_forward.1} parent=5 // pred_region
        %s1889 = ssub.s32 %s20, 2
        // Predicated region
        $region69: #{mlp_forward.1} parent=67 // pred_check
          %p1890 = pneg %p186
        $region70: #{mlp_forward.1} parent=67 // pred_check_branch
          %1892 = sbr.rel (%p1890) target = $region72
        $region71: #{mlp_forward.1} parent=67 // pred_region
          %s1893 = sand.u32 %s171, 1
          %s1894 = scalar_lea.sflag [#allocation5], %s1893
          %s1895 = sand.u32 %s171, 1
          %s1896 = smul.addr %s1895, 512
          %s1897 = scalar_lea.vmem [#allocation9], %s1896
          %1898 = dma.done %s1894, 8192
        $region72: #{mlp_forward.1} parent=67 // pred_fallthru
          _
      $region68: #{mlp_forward.1} parent=5 // pred_fallthru
        _
    $region6: #{mlp_forward.1} parent=1 // loop_footer
      %s24 = sadd.s32 1, %s20
    $region7: #{mlp_forward.1} parent=1 // loop_footer_branch
      %19 = sbr.rel target = $region3
    $region8: #{mlp_forward.1} parent=1 // loop_exit
      _
    %1899 = vsyncpa [#allocation4], 1
    %s1900 = scalar_lea.sflag [#allocation4], 1
    %1901 = vsyncpa %s1900, 1
    %1902 = vsyncpa [#allocation7], 1
    %s1903 = scalar_lea.sflag [#allocation7], 1
    %1904 = vsyncpa %s1903, 1
    %1905 = vsyncpa [#allocation5], 1
    %s1906 = scalar_lea.sflag [#allocation5], 1
    %1907 = vsyncpa %s1906, 1

</llo_original>
